<compile_context>
chip_gen: v7x
topology: tpu7x:2x2x1
jax: 0.10.0
libtpu: 0.0.40
codegen_flags: <defaults>
</compile_context>

<pallas_src>
import functools
import math

import jax
import jax.numpy as jnp
from jax import lax
from jax.experimental import pallas as pl
from jax.experimental.pallas import tpu as pltpu  # noqa: F401  (not needed for this small fused kernel)

# ---------------- config (small, synthetic) ----------------
HIDDEN = 64
N_HEADS = 4
N_KV_HEADS = 2
HEAD_DIM = HIDDEN // N_HEADS            # 16
N_KV_GROUPS = N_HEADS // N_KV_HEADS     # 2
INTERMEDIATE = 128
MAX_LEN = 16
RMS_EPS = 1e-6
ROPE_THETA = 10000.0


# ---------------- fused decoder-layer Pallas kernel ----------------
def _decoder_layer_kernel(x_ref, ln1_ref, ln2_ref, wqkv_ref, wo_ref, wgu_ref,
                          wd_ref, cos_ref, sin_ref, mask_ref, oh_ref,
                          kc_ref, vc_ref,
                          out_ref, kc_out_ref, vc_out_ref,
                          *, eps, scale):
    x = x_ref[...]                                  # [R, H], R == bsz (q_len == 1)
    rows = x.shape[0]
    half = HEAD_DIM // 2
    q_dim = N_HEADS * HEAD_DIM
    kv_dim = N_KV_HEADS * HEAD_DIM

    def rmsnorm(t, w):
        # LlamaRMSNorm: divide by max(|t|) over hidden (the MaxPool1d), then RMS-norm.
        t = t / jnp.max(jnp.abs(t), axis=-1, keepdims=True)
        var = jnp.mean(t * t, axis=-1, keepdims=True)
        return w * (t * lax.rsqrt(var + eps))

    # ---- input RMSNorm -------------------------------------------------------
    h = rmsnorm(x, ln1_ref[...])

    # ---- fused QKV projection: one lane-dense [R,H] @ [H, H+2*KV] matmul -----
    qkv = jnp.dot(h, wqkv_ref[...], preferred_element_type=jnp.float32)  # [R,128]
    q = qkv[:, :q_dim]                              # [R, 64]
    k = qkv[:, q_dim:q_dim + kv_dim]                # [R, 32]
    v = qkv[:, q_dim + kv_dim:]                     # [R, 32]

    # ---- RoPE: rotate_half per head, in-register -----------------------------
    cos = cos_ref[...]                              # [R, head_dim]
    sin = sin_ref[...]

    def rope(t, n_h):
        parts = []
        for hh in range(n_h):
            th = t[:, hh * HEAD_DIM:(hh + 1) * HEAD_DIM]              # [R, hd]
            rot = jnp.concatenate([-th[:, half:], th[:, :half]], axis=-1)
            parts.append(th * cos + rot * sin)
        return jnp.concatenate(parts, axis=-1)

    q = rope(q, N_HEADS)                            # [R, H]
    k = rope(k, N_KV_HEADS)                         # [R, KV]

    # ---- KV-cache update: replace row `token_id` via one-hot select ----------
    # cache layout: [max_len, bsz*n_kv*head_dim]; new row ordering is (b, kv, hd).
    new_k_row = jnp.concatenate([k[b:b + 1, :] for b in range(rows)], axis=-1)
    new_v_row = jnp.concatenate([v[b:b + 1, :] for b in range(rows)], axis=-1)
    oh = oh_ref[...]                                # [max_len, 1], 1.0 at token_id
    kc = kc_ref[...] * (1.0 - oh) + new_k_row * oh  # [max_len, bsz*n_kv*hd]
    vc = vc_ref[...] * (1.0 - oh) + new_v_row * oh
    kc_out_ref[...] = kc                            # aliased to the input cache buffer
    vc_out_ref[...] = vc

    # ---- GQA attention over all batch*heads (un-duplicated cache) ------------
    m = mask_ref[...]                               # [1, max_len], 1.0 = masked
    row_chunks = []
    for b in range(rows):
        head_chunks = []
        for kv in range(N_KV_HEADS):
            c0 = (b * N_KV_HEADS + kv) * HEAD_DIM
            k_bh = kc[:, c0:c0 + HEAD_DIM]          # [T, hd] read once per KV head
            v_bh = vc[:, c0:c0 + HEAD_DIM]          # [T, hd]
            for g in range(N_KV_GROUPS):
                hq = kv * N_KV_GROUPS + g
                q_bh = q[b:b + 1, hq * HEAD_DIM:(hq + 1) * HEAD_DIM]  # [1, hd]
                s = lax.dot_general(q_bh, k_bh, (((1,), (1,)), ((), ())),
                                    preferred_element_type=jnp.float32) * scale
                s = s * (1.0 - m) + m * (-99999.0)
                s = s - jnp.max(s, axis=-1, keepdims=True)
                p = jnp.exp(s)
                p = p / jnp.sum(p, axis=-1, keepdims=True)
                head_chunks.append(
                    jnp.dot(p, v_bh, preferred_element_type=jnp.float32))  # [1, hd]
        row_chunks.append(jnp.concatenate(head_chunks, axis=-1))            # [1, H]
    attn = jnp.concatenate(row_chunks, axis=0)      # [R, H]

    # ---- o_proj + residual ----------------------------------------------------
    h1 = jnp.dot(attn, wo_ref[...], preferred_element_type=jnp.float32) + x

    # ---- post-attention RMSNorm + fused gate|up + SiLU + down_proj + residual -
    hn = rmsnorm(h1, ln2_ref[...])
    gu = jnp.dot(hn, wgu_ref[...], preferred_element_type=jnp.float32)   # [R, 2I]
    gate = gu[:, :INTERMEDIATE]
    up = gu[:, INTERMEDIATE:]
    act = gate * jax.nn.sigmoid(gate) * up          # SiLU(gate) * up
    out_ref[...] = (
        jnp.dot(act, wd_ref[...], preferred_element_type=jnp.float32) + h1)


# ---------------- wrapper / glue ----------------
def prepare_params(params):
    """One-time weight prep: fuse QKV and gate|up, pre-transpose all Linears."""
    return {
        "ln1_w": params["ln1_w"].reshape(1, -1),
        "ln2_w": params["ln2_w"].reshape(1, -1),
        "wqkv_t": jnp.concatenate(
            [params["q_w"], params["k_w"], params["v_w"]], axis=0).T,   # [H, H+2KV]
        "wo_t": params["o_w"].T,                                        # [H, H]
        "wgu_t": jnp.concatenate(
            [params["gate_w"], params["up_w"]], axis=0).T,              # [H, 2I]
        "wd_t": params["down_w"].T,                                     # [I, H]
    }


def llama_decoder_layer(prepped, hidden_states, rotary_cos_sin, attention_mask,
                        past_layer_kv, token_id):
    bsz, q_len, hidden = hidden_states.shape
    assert q_len == 1, "fused decode kernel assumes a single-token decode step"
    k_cache, v_cache = past_layer_kv
    max_len = k_cache.shape[0]

    x2d = hidden_states.reshape(bsz * q_len, hidden)
    cos2d = rotary_cos_sin[:, :, 0, :].transpose(1, 0, 2).reshape(
        bsz * q_len, HEAD_DIM)
    sin2d = rotary_cos_sin[:, :, 1, :].transpose(1, 0, 2).reshape(
        bsz * q_len, HEAD_DIM)
    mask2d = attention_mask.reshape(q_len, max_len).astype(jnp.float32)
    onehot = (jnp.arange(max_len) == token_id).astype(jnp.float32).reshape(
        max_len, 1)
    kc2d = k_cache.reshape(max_len, bsz * N_KV_HEADS * HEAD_DIM)
    vc2d = v_cache.reshape(max_len, bsz * N_KV_HEADS * HEAD_DIM)

    kernel = functools.partial(_decoder_layer_kernel, eps=RMS_EPS,
                               scale=1.0 / math.sqrt(HEAD_DIM))

    out2d, kc2d_new, vc2d_new = pl.pallas_call(
        kernel,
        out_shape=(
            jax.ShapeDtypeStruct((bsz * q_len, hidden), jnp.float32),
            jax.ShapeDtypeStruct(kc2d.shape, kc2d.dtype),
            jax.ShapeDtypeStruct(vc2d.shape, vc2d.dtype),
        ),
        # caches are updated in the same HBM buffers (inputs 11/12 -> outputs 1/2)
        input_output_aliases={11: 1, 12: 2},
    )(x2d, prepped["ln1_w"], prepped["ln2_w"], prepped["wqkv_t"], prepped["wo_t"],
      prepped["wgu_t"], prepped["wd_t"], cos2d, sin2d, mask2d, onehot, kc2d, vc2d)

    out = out2d.reshape(bsz, q_len, hidden)
    k_new = kc2d_new.reshape(max_len, bsz, N_KV_HEADS, HEAD_DIM)
    v_new = vc2d_new.reshape(max_len, bsz, N_KV_HEADS, HEAD_DIM)
    return out, (k_new, v_new)


# ---------------- pure-JAX reference (mirrors the torch module) ----------------
def ref_decoder_layer(params, hidden_states, rotary_cos_sin, attention_mask,
                      past_layer_kv, token_id):
    bsz, q_len, hidden = hidden_states.shape
    k_cache, v_cache = past_layer_kv
    max_len = k_cache.shape[0]

    def rmsnorm_ref(x, w):
        x = x / jnp.max(jnp.abs(x), axis=-1, keepdims=True)
        var = jnp.mean(x * x, axis=-1, keepdims=True)
        return w * (x * lax.rsqrt(var + RMS_EPS))

    def rotate_half(x):
        half = x.shape[-1] // 2
        return jnp.concatenate([-x[..., half:], x[..., :half]], axis=-1)

    residual = hidden_states
    h = rmsnorm_ref(hidden_states, params["ln1_w"])

    q = h @ params["q_w"].T
    k = h @ params["k_w"].T
    v = h @ params["v_w"].T

    q = q.reshape(bsz, q_len, N_HEADS, HEAD_DIM).transpose(1, 0, 2, 3)
    k = k.reshape(bsz, q_len, N_KV_HEADS, HEAD_DIM).transpose(1, 0, 2, 3)
    v = v.reshape(bsz, q_len, N_KV_HEADS, HEAD_DIM).transpose(1, 0, 2, 3)

    cos = rotary_cos_sin[:, :, 0:1, :]
    sin = rotary_cos_sin[:, :, 1:2, :]
    q = q * cos + rotate_half(q) * sin
    k = k * cos + rotate_half(k) * sin

    k_cache = k_cache.at[token_id].set(k[0])
    v_cache = v_cache.at[token_id].set(v[0])

    def repeat_kv(kv):
        kv = jnp.broadcast_to(
            kv[:, :, :, None, :],
            (max_len, bsz, N_KV_HEADS, N_KV_GROUPS, HEAD_DIM))
        return kv.reshape(max_len, bsz * N_HEADS, HEAD_DIM)

    key_states = repeat_kv(k_cache)
    value_states = repeat_kv(v_cache)

    q_bh = q.reshape(q_len, bsz * N_HEADS, HEAD_DIM).transpose(1, 0, 2)
    aw = jnp.einsum("bqd,bkd->bqk", q_bh,
                    key_states.transpose(1, 0, 2)) / math.sqrt(HEAD_DIM)
    aw = aw * (1 - attention_mask) + attention_mask * (-99999.0)
    aw = jax.nn.softmax(aw, axis=-1)
    attn = jnp.einsum("bqk,bkd->bqd", aw, value_states.transpose(1, 0, 2))
    attn = attn.reshape(bsz, N_HEADS, q_len, HEAD_DIM).transpose(0, 2, 1, 3)
    attn = attn.reshape(bsz, q_len, hidden) @ params["o_w"].T

    h = residual + attn
    hn = rmsnorm_ref(h, params["ln2_w"])
    gate = hn @ params["gate_w"].T
    up = hn @ params["up_w"].T
    out = h + (jax.nn.silu(gate) * up) @ params["down_w"].T
    return out, (k_cache, v_cache)


if __name__ == "__main__":
    key = jax.random.PRNGKey(0)
    keys = jax.random.split(key, 12)

    bsz, q_len = 2, 1          # single decode step with a KV cache
    token_id = 5

    def init(k, shape, scale=0.02):
        return scale * jax.random.normal(k, shape, dtype=jnp.float32)

    params = {
        "q_w": init(keys[0], (N_HEADS * HEAD_DIM, HIDDEN)),
        "k_w": init(keys[1], (N_KV_HEADS * HEAD_DIM, HIDDEN)),
        "v_w": init(keys[2], (N_KV_HEADS * HEAD_DIM, HIDDEN)),
        "o_w": init(keys[3], (HIDDEN, HIDDEN)),
        "gate_w": init(keys[4], (INTERMEDIATE, HIDDEN)),
        "up_w": init(keys[5], (INTERMEDIATE, HIDDEN)),
        "down_w": init(keys[6], (HIDDEN, INTERMEDIATE)),
        "ln1_w": 1.0 + init(keys[7], (HIDDEN,), scale=0.1),
        "ln2_w": 1.0 + init(keys[8], (HIDDEN,), scale=0.1),
    }

    hidden_states = jax.random.normal(keys[9], (bsz, q_len, HIDDEN),
                                      dtype=jnp.float32)
    k_cache = 0.1 * jax.random.normal(
        keys[10], (MAX_LEN, bsz, N_KV_HEADS, HEAD_DIM), dtype=jnp.float32)
    v_cache = 0.1 * jax.random.normal(
        keys[11], (MAX_LEN, bsz, N_KV_HEADS, HEAD_DIM), dtype=jnp.float32)

    # rotary cos/sin for position `token_id`: [q_len, bsz, 2, head_dim]
    inv_freq = 1.0 / (ROPE_THETA ** (
        jnp.arange(0, HEAD_DIM, 2, dtype=jnp.float32) / HEAD_DIM))
    freqs = token_id * inv_freq
    emb = jnp.concatenate([freqs, freqs], axis=-1)
    rotary_cos_sin = jnp.broadcast_to(
        jnp.stack([jnp.cos(emb), jnp.sin(emb)], axis=0)[None, None, :, :],
        (q_len, bsz, 2, HEAD_DIM)).astype(jnp.float32)

    # causal mask (1 = masked) for a decode step at position `token_id`
    pos = jnp.arange(MAX_LEN)
    attention_mask = (pos > token_id).astype(jnp.float32).reshape(q_len, MAX_LEN)

    # reference first (pure JAX, pristine inputs)
    ref_out, (k_ref, v_ref) = ref_decoder_layer(
        params, hidden_states, rotary_cos_sin, attention_mask,
        (k_cache, v_cache), token_id)

    # fused Pallas decode step
    prepped = prepare_params(params)
    out, (k_new, v_new) = llama_decoder_layer(
        prepped, hidden_states, rotary_cos_sin, attention_mask,
        (k_cache, v_cache), token_id)
    out = jax.block_until_ready(out)

    assert out.shape == (bsz, q_len, HIDDEN)
    assert jnp.allclose(out, ref_out, atol=1e-4, rtol=1e-4), \
        float(jnp.max(jnp.abs(out - ref_out)))
    assert jnp.allclose(k_new, k_ref, atol=1e-5)
    assert jnp.allclose(v_new, v_ref, atol=1e-5)
    print("KERNEL_OK")
</pallas_src>

<mosaic_0001>
module attributes {stable_mosaic.version = 11 : i64} {
  func.func @_decoder_layer_kernel(%arg0: memref<2x64xf32, #tpu.memory_space<vmem>>, %arg1: memref<1x64xf32, #tpu.memory_space<vmem>>, %arg2: memref<1x64xf32, #tpu.memory_space<vmem>>, %arg3: memref<64x128xf32, #tpu.memory_space<vmem>>, %arg4: memref<64x64xf32, #tpu.memory_space<vmem>>, %arg5: memref<64x256xf32, #tpu.memory_space<vmem>>, %arg6: memref<128x64xf32, #tpu.memory_space<vmem>>, %arg7: memref<2x16xf32, #tpu.memory_space<vmem>>, %arg8: memref<2x16xf32, #tpu.memory_space<vmem>>, %arg9: memref<1x16xf32, #tpu.memory_space<vmem>>, %arg10: memref<16x1xf32, #tpu.memory_space<vmem>>, %arg11: memref<16x64xf32, #tpu.memory_space<vmem>>, %arg12: memref<16x64xf32, #tpu.memory_space<vmem>>, %arg13: memref<2x64xf32, #tpu.memory_space<vmem>>, %arg14: memref<16x64xf32, #tpu.memory_space<vmem>>, %arg15: memref<16x64xf32, #tpu.memory_space<vmem>>) attributes {dimension_semantics = [], scalar_prefetch = 0 : i64, scratch_operands = 0 : i64, tpu.core_type = #tpu.core_type<tc>} {
    %c0 = arith.constant 0 : index
    %c0_0 = arith.constant 0 : index
    %0 = vector.load %arg0[%c0, %c0_0] : memref<2x64xf32, #tpu.memory_space<vmem>>, vector<2x64xf32>
    %c0_1 = arith.constant 0 : index
    %c0_2 = arith.constant 0 : index
    %1 = vector.load %arg1[%c0_1, %c0_2] : memref<1x64xf32, #tpu.memory_space<vmem>>, vector<1x64xf32>
    %2 = math.absf %0 : vector<2x64xf32>
    %cst = arith.constant dense<0xFF800000> : vector<2xf32>
    %3 = vector.multi_reduction <maximumf>, %2, %cst [1] : vector<2x64xf32> to vector<2xf32>
    %4 = vector.shape_cast %3 : vector<2xf32> to vector<2x1xf32>
    %5 = vector.broadcast %4 : vector<2x1xf32> to vector<2x64xf32>
    %6 = arith.divf %0, %5 : vector<2x64xf32>
    %7 = arith.mulf %6, %6 : vector<2x64xf32>
    %cst_3 = arith.constant dense<0.000000e+00> : vector<2xf32>
    %8 = vector.multi_reduction <add>, %7, %cst_3 [1] : vector<2x64xf32> to vector<2xf32>
    %9 = vector.shape_cast %8 : vector<2xf32> to vector<2x1xf32>
    %cst_4 = arith.constant 6.400000e+01 : f32
    %10 = vector.broadcast %cst_4 : f32 to vector<2x1xf32>
    %11 = arith.divf %9, %10 : vector<2x1xf32>
    %cst_5 = arith.constant 9.99999997E-7 : f32
    %12 = vector.broadcast %cst_5 : f32 to vector<2x1xf32>
    %13 = arith.addf %11, %12 : vector<2x1xf32>
    %14 = math.rsqrt %13 : vector<2x1xf32>
    %15 = vector.broadcast %14 : vector<2x1xf32> to vector<2x64xf32>
    %16 = arith.mulf %6, %15 : vector<2x64xf32>
    %17 = vector.broadcast %1 : vector<1x64xf32> to vector<2x64xf32>
    %18 = arith.mulf %17, %16 : vector<2x64xf32>
    %c0_6 = arith.constant 0 : index
    %c0_7 = arith.constant 0 : index
    %19 = vector.load %arg3[%c0_6, %c0_7] : memref<64x128xf32, #tpu.memory_space<vmem>>, vector<64x128xf32>
    %cst_8 = arith.constant dense<0.000000e+00> : vector<2x128xf32>
    %20 = tpu.matmul %18, %19, %cst_8 {dimension_numbers = #tpu.dot_dimension_numbers<[1], [0], [0], [1], [0, 0, 1, 1], [], []>} : vector<2x64xf32>, vector<64x128xf32>, vector<2x128xf32> -> vector<2x128xf32>
    %21 = vector.extract_strided_slice %20 {offsets = [0, 0], sizes = [2, 64], strides = [1, 1]} : vector<2x128xf32> to vector<2x64xf32>
    %22 = vector.extract_strided_slice %20 {offsets = [0, 64], sizes = [2, 32], strides = [1, 1]} : vector<2x128xf32> to vector<2x32xf32>
    %23 = vector.extract_strided_slice %20 {offsets = [0, 96], sizes = [2, 32], strides = [1, 1]} : vector<2x128xf32> to vector<2x32xf32>
    %c0_9 = arith.constant 0 : index
    %c0_10 = arith.constant 0 : index
    %24 = vector.load %arg7[%c0_9, %c0_10] : memref<2x16xf32, #tpu.memory_space<vmem>>, vector<2x16xf32>
    %c0_11 = arith.constant 0 : index
    %c0_12 = arith.constant 0 : index
    %25 = vector.load %arg8[%c0_11, %c0_12] : memref<2x16xf32, #tpu.memory_space<vmem>>, vector<2x16xf32>
    %26 = vector.extract_strided_slice %21 {offsets = [0, 0], sizes = [2, 16], strides = [1, 1]} : vector<2x64xf32> to vector<2x16xf32>
    %27 = vector.extract_strided_slice %26 {offsets = [0, 8], sizes = [2, 8], strides = [1, 1]} : vector<2x16xf32> to vector<2x8xf32>
    %cst_13 = arith.constant 0.000000e+00 : f32
    %28 = vector.broadcast %cst_13 : f32 to vector<2x8xf32>
    %29 = arith.subf %28, %27 : vector<2x8xf32>
    %30 = vector.extract_strided_slice %26 {offsets = [0, 0], sizes = [2, 8], strides = [1, 1]} : vector<2x16xf32> to vector<2x8xf32>
    %31 = tpu.concatenate %29, %30 in 1 : vector<2x8xf32>, vector<2x8xf32> -> vector<2x16xf32>
    %32 = arith.mulf %26, %24 : vector<2x16xf32>
    %33 = arith.mulf %31, %25 : vector<2x16xf32>
    %34 = arith.addf %32, %33 : vector<2x16xf32>
    %35 = vector.extract_strided_slice %21 {offsets = [0, 16], sizes = [2, 16], strides = [1, 1]} : vector<2x64xf32> to vector<2x16xf32>
    %36 = vector.extract_strided_slice %35 {offsets = [0, 8], sizes = [2, 8], strides = [1, 1]} : vector<2x16xf32> to vector<2x8xf32>
    %cst_14 = arith.constant 0.000000e+00 : f32
    %37 = vector.broadcast %cst_14 : f32 to vector<2x8xf32>
    %38 = arith.subf %37, %36 : vector<2x8xf32>
    %39 = vector.extract_strided_slice %35 {offsets = [0, 0], sizes = [2, 8], strides = [1, 1]} : vector<2x16xf32> to vector<2x8xf32>
    %40 = tpu.concatenate %38, %39 in 1 : vector<2x8xf32>, vector<2x8xf32> -> vector<2x16xf32>
    %41 = arith.mulf %35, %24 : vector<2x16xf32>
    %42 = arith.mulf %40, %25 : vector<2x16xf32>
    %43 = arith.addf %41, %42 : vector<2x16xf32>
    %44 = vector.extract_strided_slice %21 {offsets = [0, 32], sizes = [2, 16], strides = [1, 1]} : vector<2x64xf32> to vector<2x16xf32>
    %45 = vector.extract_strided_slice %44 {offsets = [0, 8], sizes = [2, 8], strides = [1, 1]} : vector<2x16xf32> to vector<2x8xf32>
    %cst_15 = arith.constant 0.000000e+00 : f32
    %46 = vector.broadcast %cst_15 : f32 to vector<2x8xf32>
    %47 = arith.subf %46, %45 : vector<2x8xf32>
    %48 = vector.extract_strided_slice %44 {offsets = [0, 0], sizes = [2, 8], strides = [1, 1]} : vector<2x16xf32> to vector<2x8xf32>
    %49 = tpu.concatenate %47, %48 in 1 : vector<2x8xf32>, vector<2x8xf32> -> vector<2x16xf32>
    %50 = arith.mulf %44, %24 : vector<2x16xf32>
    %51 = arith.mulf %49, %25 : vector<2x16xf32>
    %52 = arith.addf %50, %51 : vector<2x16xf32>
    %53 = vector.extract_strided_slice %21 {offsets = [0, 48], sizes = [2, 16], strides = [1, 1]} : vector<2x64xf32> to vector<2x16xf32>
    %54 = vector.extract_strided_slice %53 {offsets = [0, 8], sizes = [2, 8], strides = [1, 1]} : vector<2x16xf32> to vector<2x8xf32>
    %cst_16 = arith.constant 0.000000e+00 : f32
    %55 = vector.broadcast %cst_16 : f32 to vector<2x8xf32>
    %56 = arith.subf %55, %54 : vector<2x8xf32>
    %57 = vector.extract_strided_slice %53 {offsets = [0, 0], sizes = [2, 8], strides = [1, 1]} : vector<2x16xf32> to vector<2x8xf32>
    %58 = tpu.concatenate %56, %57 in 1 : vector<2x8xf32>, vector<2x8xf32> -> vector<2x16xf32>
    %59 = arith.mulf %53, %24 : vector<2x16xf32>
    %60 = arith.mulf %58, %25 : vector<2x16xf32>
    %61 = arith.addf %59, %60 : vector<2x16xf32>
    %62 = tpu.concatenate %34, %43, %52, %61 in 1 : vector<2x16xf32>, vector<2x16xf32>, vector<2x16xf32>, vector<2x16xf32> -> vector<2x64xf32>
    %63 = vector.extract_strided_slice %22 {offsets = [0, 0], sizes = [2, 16], strides = [1, 1]} : vector<2x32xf32> to vector<2x16xf32>
    %64 = vector.extract_strided_slice %63 {offsets = [0, 8], sizes = [2, 8], strides = [1, 1]} : vector<2x16xf32> to vector<2x8xf32>
    %cst_17 = arith.constant 0.000000e+00 : f32
    %65 = vector.broadcast %cst_17 : f32 to vector<2x8xf32>
    %66 = arith.subf %65, %64 : vector<2x8xf32>
    %67 = vector.extract_strided_slice %63 {offsets = [0, 0], sizes = [2, 8], strides = [1, 1]} : vector<2x16xf32> to vector<2x8xf32>
    %68 = tpu.concatenate %66, %67 in 1 : vector<2x8xf32>, vector<2x8xf32> -> vector<2x16xf32>
    %69 = arith.mulf %63, %24 : vector<2x16xf32>
    %70 = arith.mulf %68, %25 : vector<2x16xf32>
    %71 = arith.addf %69, %70 : vector<2x16xf32>
    %72 = vector.extract_strided_slice %22 {offsets = [0, 16], sizes = [2, 16], strides = [1, 1]} : vector<2x32xf32> to vector<2x16xf32>
    %73 = vector.extract_strided_slice %72 {offsets = [0, 8], sizes = [2, 8], strides = [1, 1]} : vector<2x16xf32> to vector<2x8xf32>
    %cst_18 = arith.constant 0.000000e+00 : f32
    %74 = vector.broadcast %cst_18 : f32 to vector<2x8xf32>
    %75 = arith.subf %74, %73 : vector<2x8xf32>
    %76 = vector.extract_strided_slice %72 {offsets = [0, 0], sizes = [2, 8], strides = [1, 1]} : vector<2x16xf32> to vector<2x8xf32>
    %77 = tpu.concatenate %75, %76 in 1 : vector<2x8xf32>, vector<2x8xf32> -> vector<2x16xf32>
    %78 = arith.mulf %72, %24 : vector<2x16xf32>
    %79 = arith.mulf %77, %25 : vector<2x16xf32>
    %80 = arith.addf %78, %79 : vector<2x16xf32>
    %81 = tpu.concatenate %71, %80 in 1 : vector<2x16xf32>, vector<2x16xf32> -> vector<2x32xf32>
    %82 = vector.extract_strided_slice %81 {offsets = [0, 0], sizes = [1, 32], strides = [1, 1]} : vector<2x32xf32> to vector<1x32xf32>
    %83 = vector.extract_strided_slice %81 {offsets = [1, 0], sizes = [1, 32], strides = [1, 1]} : vector<2x32xf32> to vector<1x32xf32>
    %84 = tpu.concatenate %82, %83 in 1 : vector<1x32xf32>, vector<1x32xf32> -> vector<1x64xf32>
    %85 = vector.extract_strided_slice %23 {offsets = [0, 0], sizes = [1, 32], strides = [1, 1]} : vector<2x32xf32> to vector<1x32xf32>
    %86 = vector.extract_strided_slice %23 {offsets = [1, 0], sizes = [1, 32], strides = [1, 1]} : vector<2x32xf32> to vector<1x32xf32>
    %87 = tpu.concatenate %85, %86 in 1 : vector<1x32xf32>, vector<1x32xf32> -> vector<1x64xf32>
    %c0_19 = arith.constant 0 : index
    %c0_20 = arith.constant 0 : index
    %88 = vector.load %arg10[%c0_19, %c0_20] : memref<16x1xf32, #tpu.memory_space<vmem>>, vector<16x1xf32>
    %c0_21 = arith.constant 0 : index
    %c0_22 = arith.constant 0 : index
    %89 = vector.load %arg11[%c0_21, %c0_22] : memref<16x64xf32, #tpu.memory_space<vmem>>, vector<16x64xf32>
    %cst_23 = arith.constant 1.000000e+00 : f32
    %90 = vector.broadcast %cst_23 : f32 to vector<16x1xf32>
    %91 = arith.subf %90, %88 : vector<16x1xf32>
    %92 = vector.broadcast %91 : vector<16x1xf32> to vector<16x64xf32>
    %93 = arith.mulf %89, %92 : vector<16x64xf32>
    %94 = vector.broadcast %84 : vector<1x64xf32> to vector<16x64xf32>
    %95 = vector.broadcast %88 : vector<16x1xf32> to vector<16x64xf32>
    %96 = arith.mulf %94, %95 : vector<16x64xf32>
    %97 = arith.addf %93, %96 : vector<16x64xf32>
    %c0_24 = arith.constant 0 : index
    %c0_25 = arith.constant 0 : index
    %98 = vector.load %arg12[%c0_24, %c0_25] : memref<16x64xf32, #tpu.memory_space<vmem>>, vector<16x64xf32>
    %cst_26 = arith.constant 1.000000e+00 : f32
    %99 = vector.broadcast %cst_26 : f32 to vector<16x1xf32>
    %100 = arith.subf %99, %88 : vector<16x1xf32>
    %101 = vector.broadcast %100 : vector<16x1xf32> to vector<16x64xf32>
    %102 = arith.mulf %98, %101 : vector<16x64xf32>
    %103 = vector.broadcast %87 : vector<1x64xf32> to vector<16x64xf32>
    %104 = vector.broadcast %88 : vector<16x1xf32> to vector<16x64xf32>
    %105 = arith.mulf %103, %104 : vector<16x64xf32>
    %106 = arith.addf %102, %105 : vector<16x64xf32>
    %c0_27 = arith.constant 0 : index
    %c0_28 = arith.constant 0 : index
    %107 = vector.load %arg14[%c0_27, %c0_28] : memref<16x64xf32, #tpu.memory_space<vmem>>, vector<16x64xf32>
    tpu.vector_store %arg14[%c0_27, %c0_28], %97 {strides = array<i32>} : memref<16x64xf32, #tpu.memory_space<vmem>>, vector<16x64xf32>,
    %c0_29 = arith.constant 0 : index
    %c0_30 = arith.constant 0 : index
    %108 = vector.load %arg15[%c0_29, %c0_30] : memref<16x64xf32, #tpu.memory_space<vmem>>, vector<16x64xf32>
    tpu.vector_store %arg15[%c0_29, %c0_30], %106 {strides = array<i32>} : memref<16x64xf32, #tpu.memory_space<vmem>>, vector<16x64xf32>,
    %c0_31 = arith.constant 0 : index
    %c0_32 = arith.constant 0 : index
    %109 = vector.load %arg9[%c0_31, %c0_32] : memref<1x16xf32, #tpu.memory_space<vmem>>, vector<1x16xf32>
    %110 = vector.extract_strided_slice %97 {offsets = [0, 0], sizes = [16, 16], strides = [1, 1]} : vector<16x64xf32> to vector<16x16xf32>
    %111 = vector.extract_strided_slice %106 {offsets = [0, 0], sizes = [16, 16], strides = [1, 1]} : vector<16x64xf32> to vector<16x16xf32>
    %112 = vector.extract_strided_slice %62 {offsets = [0, 0], sizes = [1, 16], strides = [1, 1]} : vector<2x64xf32> to vector<1x16xf32>
    %cst_33 = arith.constant dense<0.000000e+00> : vector<1x16xf32>
    %113 = tpu.matmul %112, %110, %cst_33 {dimension_numbers = #tpu.dot_dimension_numbers<[1], [1], [0], [0], [0, 0, 1, 0], [], []>} : vector<1x16xf32>, vector<16x16xf32>, vector<1x16xf32> -> vector<1x16xf32>
    %cst_34 = arith.constant 2.500000e-01 : f32
    %114 = vector.broadcast %cst_34 : f32 to vector<1x16xf32>
    %115 = arith.mulf %113, %114 : vector<1x16xf32>
    %cst_35 = arith.constant 1.000000e+00 : f32
    %116 = vector.broadcast %cst_35 : f32 to vector<1x16xf32>
    %117 = arith.subf %116, %109 : vector<1x16xf32>
    %118 = arith.mulf %115, %117 : vector<1x16xf32>
    %cst_36 = arith.constant -9.999900e+04 : f32
    %119 = vector.broadcast %cst_36 : f32 to vector<1x16xf32>
    %120 = arith.mulf %109, %119 : vector<1x16xf32>
    %121 = arith.addf %118, %120 : vector<1x16xf32>
    %cst_37 = arith.constant dense<0xFF800000> : vector<1xf32>
    %122 = vector.multi_reduction <maximumf>, %121, %cst_37 [1] : vector<1x16xf32> to vector<1xf32>
    %123 = vector.shape_cast %122 : vector<1xf32> to vector<1x1xf32>
    %124 = vector.broadcast %123 : vector<1x1xf32> to vector<1x16xf32>
    %125 = arith.subf %121, %124 : vector<1x16xf32>
    %126 = math.exp %125 : vector<1x16xf32>
    %cst_38 = arith.constant dense<0.000000e+00> : vector<1xf32>
    %127 = vector.multi_reduction <add>, %126, %cst_38 [1] : vector<1x16xf32> to vector<1xf32>
    %128 = vector.shape_cast %127 : vector<1xf32> to vector<1x1xf32>
    %129 = vector.broadcast %128 : vector<1x1xf32> to vector<1x16xf32>
    %130 = arith.divf %126, %129 : vector<1x16xf32>
    %cst_39 = arith.constant dense<0.000000e+00> : vector<1x16xf32>
    %131 = tpu.matmul %130, %111, %cst_39 {dimension_numbers = #tpu.dot_dimension_numbers<[1], [0], [0], [1], [0, 0, 1, 1], [], []>} : vector<1x16xf32>, vector<16x16xf32>, vector<1x16xf32> -> vector<1x16xf32>
    %132 = vector.extract_strided_slice %62 {offsets = [0, 16], sizes = [1, 16], strides = [1, 1]} : vector<2x64xf32> to vector<1x16xf32>
    %cst_40 = arith.constant dense<0.000000e+00> : vector<1x16xf32>
    %133 = tpu.matmul %132, %110, %cst_40 {dimension_numbers = #tpu.dot_dimension_numbers<[1], [1], [0], [0], [0, 0, 1, 0], [], []>} : vector<1x16xf32>, vector<16x16xf32>, vector<1x16xf32> -> vector<1x16xf32>
    %cst_41 = arith.constant 2.500000e-01 : f32
    %134 = vector.broadcast %cst_41 : f32 to vector<1x16xf32>
    %135 = arith.mulf %133, %134 : vector<1x16xf32>
    %cst_42 = arith.constant 1.000000e+00 : f32
    %136 = vector.broadcast %cst_42 : f32 to vector<1x16xf32>
    %137 = arith.subf %136, %109 : vector<1x16xf32>
    %138 = arith.mulf %135, %137 : vector<1x16xf32>
    %cst_43 = arith.constant -9.999900e+04 : f32
    %139 = vector.broadcast %cst_43 : f32 to vector<1x16xf32>
    %140 = arith.mulf %109, %139 : vector<1x16xf32>
    %141 = arith.addf %138, %140 : vector<1x16xf32>
    %cst_44 = arith.constant dense<0xFF800000> : vector<1xf32>
    %142 = vector.multi_reduction <maximumf>, %141, %cst_44 [1] : vector<1x16xf32> to vector<1xf32>
    %143 = vector.shape_cast %142 : vector<1xf32> to vector<1x1xf32>
    %144 = vector.broadcast %143 : vector<1x1xf32> to vector<1x16xf32>
    %145 = arith.subf %141, %144 : vector<1x16xf32>
    %146 = math.exp %145 : vector<1x16xf32>
    %cst_45 = arith.constant dense<0.000000e+00> : vector<1xf32>
    %147 = vector.multi_reduction <add>, %146, %cst_45 [1] : vector<1x16xf32> to vector<1xf32>
    %148 = vector.shape_cast %147 : vector<1xf32> to vector<1x1xf32>
    %149 = vector.broadcast %148 : vector<1x1xf32> to vector<1x16xf32>
    %150 = arith.divf %146, %149 : vector<1x16xf32>
    %cst_46 = arith.constant dense<0.000000e+00> : vector<1x16xf32>
    %151 = tpu.matmul %150, %111, %cst_46 {dimension_numbers = #tpu.dot_dimension_numbers<[1], [0], [0], [1], [0, 0, 1, 1], [], []>} : vector<1x16xf32>, vector<16x16xf32>, vector<1x16xf32> -> vector<1x16xf32>
    %152 = vector.extract_strided_slice %97 {offsets = [0, 16], sizes = [16, 16], strides = [1, 1]} : vector<16x64xf32> to vector<16x16xf32>
    %153 = vector.extract_strided_slice %106 {offsets = [0, 16], sizes = [16, 16], strides = [1, 1]} : vector<16x64xf32> to vector<16x16xf32>
    %154 = vector.extract_strided_slice %62 {offsets = [0, 32], sizes = [1, 16], strides = [1, 1]} : vector<2x64xf32> to vector<1x16xf32>
    %cst_47 = arith.constant dense<0.000000e+00> : vector<1x16xf32>
    %155 = tpu.matmul %154, %152, %cst_47 {dimension_numbers = #tpu.dot_dimension_numbers<[1], [1], [0], [0], [0, 0, 1, 0], [], []>} : vector<1x16xf32>, vector<16x16xf32>, vector<1x16xf32> -> vector<1x16xf32>
    %cst_48 = arith.constant 2.500000e-01 : f32
    %156 = vector.broadcast %cst_48 : f32 to vector<1x16xf32>
    %157 = arith.mulf %155, %156 : vector<1x16xf32>
    %cst_49 = arith.constant 1.000000e+00 : f32
    %158 = vector.broadcast %cst_49 : f32 to vector<1x16xf32>
    %159 = arith.subf %158, %109 : vector<1x16xf32>
    %160 = arith.mulf %157, %159 : vector<1x16xf32>
    %cst_50 = arith.constant -9.999900e+04 : f32
    %161 = vector.broadcast %cst_50 : f32 to vector<1x16xf32>
    %162 = arith.mulf %109, %161 : vector<1x16xf32>
    %163 = arith.addf %160, %162 : vector<1x16xf32>
    %cst_51 = arith.constant dense<0xFF800000> : vector<1xf32>
    %164 = vector.multi_reduction <maximumf>, %163, %cst_51 [1] : vector<1x16xf32> to vector<1xf32>
    %165 = vector.shape_cast %164 : vector<1xf32> to vector<1x1xf32>
    %166 = vector.broadcast %165 : vector<1x1xf32> to vector<1x16xf32>
    %167 = arith.subf %163, %166 : vector<1x16xf32>
    %168 = math.exp %167 : vector<1x16xf32>
    %cst_52 = arith.constant dense<0.000000e+00> : vector<1xf32>
    %169 = vector.multi_reduction <add>, %168, %cst_52 [1] : vector<1x16xf32> to vector<1xf32>
    %170 = vector.shape_cast %169 : vector<1xf32> to vector<1x1xf32>
    %171 = vector.broadcast %170 : vector<1x1xf32> to vector<1x16xf32>
    %172 = arith.divf %168, %171 : vector<1x16xf32>
    %cst_53 = arith.constant dense<0.000000e+00> : vector<1x16xf32>
    %173 = tpu.matmul %172, %153, %cst_53 {dimension_numbers = #tpu.dot_dimension_numbers<[1], [0], [0], [1], [0, 0, 1, 1], [], []>} : vector<1x16xf32>, vector<16x16xf32>, vector<1x16xf32> -> vector<1x16xf32>
    %174 = vector.extract_strided_slice %62 {offsets = [0, 48], sizes = [1, 16], strides = [1, 1]} : vector<2x64xf32> to vector<1x16xf32>
    %cst_54 = arith.constant dense<0.000000e+00> : vector<1x16xf32>
    %175 = tpu.matmul %174, %152, %cst_54 {dimension_numbers = #tpu.dot_dimension_numbers<[1], [1], [0], [0], [0, 0, 1, 0], [], []>} : vector<1x16xf32>, vector<16x16xf32>, vector<1x16xf32> -> vector<1x16xf32>
    %cst_55 = arith.constant 2.500000e-01 : f32
    %176 = vector.broadcast %cst_55 : f32 to vector<1x16xf32>
    %177 = arith.mulf %175, %176 : vector<1x16xf32>
    %cst_56 = arith.constant 1.000000e+00 : f32
    %178 = vector.broadcast %cst_56 : f32 to vector<1x16xf32>
    %179 = arith.subf %178, %109 : vector<1x16xf32>
    %180 = arith.mulf %177, %179 : vector<1x16xf32>
    %cst_57 = arith.constant -9.999900e+04 : f32
    %181 = vector.broadcast %cst_57 : f32 to vector<1x16xf32>
    %182 = arith.mulf %109, %181 : vector<1x16xf32>
    %183 = arith.addf %180, %182 : vector<1x16xf32>
    %cst_58 = arith.constant dense<0xFF800000> : vector<1xf32>
    %184 = vector.multi_reduction <maximumf>, %183, %cst_58 [1] : vector<1x16xf32> to vector<1xf32>
    %185 = vector.shape_cast %184 : vector<1xf32> to vector<1x1xf32>
    %186 = vector.broadcast %185 : vector<1x1xf32> to vector<1x16xf32>
    %187 = arith.subf %183, %186 : vector<1x16xf32>
    %188 = math.exp %187 : vector<1x16xf32>
    %cst_59 = arith.constant dense<0.000000e+00> : vector<1xf32>
    %189 = vector.multi_reduction <add>, %188, %cst_59 [1] : vector<1x16xf32> to vector<1xf32>
    %190 = vector.shape_cast %189 : vector<1xf32> to vector<1x1xf32>
    %191 = vector.broadcast %190 : vector<1x1xf32> to vector<1x16xf32>
    %192 = arith.divf %188, %191 : vector<1x16xf32>
    %cst_60 = arith.constant dense<0.000000e+00> : vector<1x16xf32>
    %193 = tpu.matmul %192, %153, %cst_60 {dimension_numbers = #tpu.dot_dimension_numbers<[1], [0], [0], [1], [0, 0, 1, 1], [], []>} : vector<1x16xf32>, vector<16x16xf32>, vector<1x16xf32> -> vector<1x16xf32>
    %194 = tpu.concatenate %131, %151, %173, %193 in 1 : vector<1x16xf32>, vector<1x16xf32>, vector<1x16xf32>, vector<1x16xf32> -> vector<1x64xf32>
    %195 = vector.extract_strided_slice %97 {offsets = [0, 32], sizes = [16, 16], strides = [1, 1]} : vector<16x64xf32> to vector<16x16xf32>
    %196 = vector.extract_strided_slice %106 {offsets = [0, 32], sizes = [16, 16], strides = [1, 1]} : vector<16x64xf32> to vector<16x16xf32>
    %197 = vector.extract_strided_slice %62 {offsets = [1, 0], sizes = [1, 16], strides = [1, 1]} : vector<2x64xf32> to vector<1x16xf32>
    %cst_61 = arith.constant dense<0.000000e+00> : vector<1x16xf32>
    %198 = tpu.matmul %197, %195, %cst_61 {dimension_numbers = #tpu.dot_dimension_numbers<[1], [1], [0], [0], [0, 0, 1, 0], [], []>} : vector<1x16xf32>, vector<16x16xf32>, vector<1x16xf32> -> vector<1x16xf32>
    %cst_62 = arith.constant 2.500000e-01 : f32
    %199 = vector.broadcast %cst_62 : f32 to vector<1x16xf32>
    %200 = arith.mulf %198, %199 : vector<1x16xf32>
    %cst_63 = arith.constant 1.000000e+00 : f32
    %201 = vector.broadcast %cst_63 : f32 to vector<1x16xf32>
    %202 = arith.subf %201, %109 : vector<1x16xf32>
    %203 = arith.mulf %200, %202 : vector<1x16xf32>
    %cst_64 = arith.constant -9.999900e+04 : f32
    %204 = vector.broadcast %cst_64 : f32 to vector<1x16xf32>
    %205 = arith.mulf %109, %204 : vector<1x16xf32>
    %206 = arith.addf %203, %205 : vector<1x16xf32>
    %cst_65 = arith.constant dense<0xFF800000> : vector<1xf32>
    %207 = vector.multi_reduction <maximumf>, %206, %cst_65 [1] : vector<1x16xf32> to vector<1xf32>
    %208 = vector.shape_cast %207 : vector<1xf32> to vector<1x1xf32>
    %209 = vector.broadcast %208 : vector<1x1xf32> to vector<1x16xf32>
    %210 = arith.subf %206, %209 : vector<1x16xf32>
    %211 = math.exp %210 : vector<1x16xf32>
    %cst_66 = arith.constant dense<0.000000e+00> : vector<1xf32>
    %212 = vector.multi_reduction <add>, %211, %cst_66 [1] : vector<1x16xf32> to vector<1xf32>
    %213 = vector.shape_cast %212 : vector<1xf32> to vector<1x1xf32>
    %214 = vector.broadcast %213 : vector<1x1xf32> to vector<1x16xf32>
    %215 = arith.divf %211, %214 : vector<1x16xf32>
    %cst_67 = arith.constant dense<0.000000e+00> : vector<1x16xf32>
    %216 = tpu.matmul %215, %196, %cst_67 {dimension_numbers = #tpu.dot_dimension_numbers<[1], [0], [0], [1], [0, 0, 1, 1], [], []>} : vector<1x16xf32>, vector<16x16xf32>, vector<1x16xf32> -> vector<1x16xf32>
    %217 = vector.extract_strided_slice %62 {offsets = [1, 16], sizes = [1, 16], strides = [1, 1]} : vector<2x64xf32> to vector<1x16xf32>
    %cst_68 = arith.constant dense<0.000000e+00> : vector<1x16xf32>
    %218 = tpu.matmul %217, %195, %cst_68 {dimension_numbers = #tpu.dot_dimension_numbers<[1], [1], [0], [0], [0, 0, 1, 0], [], []>} : vector<1x16xf32>, vector<16x16xf32>, vector<1x16xf32> -> vector<1x16xf32>
    %cst_69 = arith.constant 2.500000e-01 : f32
    %219 = vector.broadcast %cst_69 : f32 to vector<1x16xf32>
    %220 = arith.mulf %218, %219 : vector<1x16xf32>
    %cst_70 = arith.constant 1.000000e+00 : f32
    %221 = vector.broadcast %cst_70 : f32 to vector<1x16xf32>
    %222 = arith.subf %221, %109 : vector<1x16xf32>
    %223 = arith.mulf %220, %222 : vector<1x16xf32>
    %cst_71 = arith.constant -9.999900e+04 : f32
    %224 = vector.broadcast %cst_71 : f32 to vector<1x16xf32>
    %225 = arith.mulf %109, %224 : vector<1x16xf32>
    %226 = arith.addf %223, %225 : vector<1x16xf32>
    %cst_72 = arith.constant dense<0xFF800000> : vector<1xf32>
    %227 = vector.multi_reduction <maximumf>, %226, %cst_72 [1] : vector<1x16xf32> to vector<1xf32>
    %228 = vector.shape_cast %227 : vector<1xf32> to vector<1x1xf32>
    %229 = vector.broadcast %228 : vector<1x1xf32> to vector<1x16xf32>
    %230 = arith.subf %226, %229 : vector<1x16xf32>
    %231 = math.exp %230 : vector<1x16xf32>
    %cst_73 = arith.constant dense<0.000000e+00> : vector<1xf32>
    %232 = vector.multi_reduction <add>, %231, %cst_73 [1] : vector<1x16xf32> to vector<1xf32>
    %233 = vector.shape_cast %232 : vector<1xf32> to vector<1x1xf32>
    %234 = vector.broadcast %233 : vector<1x1xf32> to vector<1x16xf32>
    %235 = arith.divf %231, %234 : vector<1x16xf32>
    %cst_74 = arith.constant dense<0.000000e+00> : vector<1x16xf32>
    %236 = tpu.matmul %235, %196, %cst_74 {dimension_numbers = #tpu.dot_dimension_numbers<[1], [0], [0], [1], [0, 0, 1, 1], [], []>} : vector<1x16xf32>, vector<16x16xf32>, vector<1x16xf32> -> vector<1x16xf32>
    %237 = vector.extract_strided_slice %97 {offsets = [0, 48], sizes = [16, 16], strides = [1, 1]} : vector<16x64xf32> to vector<16x16xf32>
    %238 = vector.extract_strided_slice %106 {offsets = [0, 48], sizes = [16, 16], strides = [1, 1]} : vector<16x64xf32> to vector<16x16xf32>
    %239 = vector.extract_strided_slice %62 {offsets = [1, 32], sizes = [1, 16], strides = [1, 1]} : vector<2x64xf32> to vector<1x16xf32>
    %cst_75 = arith.constant dense<0.000000e+00> : vector<1x16xf32>
    %240 = tpu.matmul %239, %237, %cst_75 {dimension_numbers = #tpu.dot_dimension_numbers<[1], [1], [0], [0], [0, 0, 1, 0], [], []>} : vector<1x16xf32>, vector<16x16xf32>, vector<1x16xf32> -> vector<1x16xf32>
    %cst_76 = arith.constant 2.500000e-01 : f32
    %241 = vector.broadcast %cst_76 : f32 to vector<1x16xf32>
    %242 = arith.mulf %240, %241 : vector<1x16xf32>
    %cst_77 = arith.constant 1.000000e+00 : f32
    %243 = vector.broadcast %cst_77 : f32 to vector<1x16xf32>
    %244 = arith.subf %243, %109 : vector<1x16xf32>
    %245 = arith.mulf %242, %244 : vector<1x16xf32>
    %cst_78 = arith.constant -9.999900e+04 : f32
    %246 = vector.broadcast %cst_78 : f32 to vector<1x16xf32>
    %247 = arith.mulf %109, %246 : vector<1x16xf32>
    %248 = arith.addf %245, %247 : vector<1x16xf32>
    %cst_79 = arith.constant dense<0xFF800000> : vector<1xf32>
    %249 = vector.multi_reduction <maximumf>, %248, %cst_79 [1] : vector<1x16xf32> to vector<1xf32>
    %250 = vector.shape_cast %249 : vector<1xf32> to vector<1x1xf32>
    %251 = vector.broadcast %250 : vector<1x1xf32> to vector<1x16xf32>
    %252 = arith.subf %248, %251 : vector<1x16xf32>
    %253 = math.exp %252 : vector<1x16xf32>
    %cst_80 = arith.constant dense<0.000000e+00> : vector<1xf32>
    %254 = vector.multi_reduction <add>, %253, %cst_80 [1] : vector<1x16xf32> to vector<1xf32>
    %255 = vector.shape_cast %254 : vector<1xf32> to vector<1x1xf32>
    %256 = vector.broadcast %255 : vector<1x1xf32> to vector<1x16xf32>
    %257 = arith.divf %253, %256 : vector<1x16xf32>
    %cst_81 = arith.constant dense<0.000000e+00> : vector<1x16xf32>
    %258 = tpu.matmul %257, %238, %cst_81 {dimension_numbers = #tpu.dot_dimension_numbers<[1], [0], [0], [1], [0, 0, 1, 1], [], []>} : vector<1x16xf32>, vector<16x16xf32>, vector<1x16xf32> -> vector<1x16xf32>
    %259 = vector.extract_strided_slice %62 {offsets = [1, 48], sizes = [1, 16], strides = [1, 1]} : vector<2x64xf32> to vector<1x16xf32>
    %cst_82 = arith.constant dense<0.000000e+00> : vector<1x16xf32>
    %260 = tpu.matmul %259, %237, %cst_82 {dimension_numbers = #tpu.dot_dimension_numbers<[1], [1], [0], [0], [0, 0, 1, 0], [], []>} : vector<1x16xf32>, vector<16x16xf32>, vector<1x16xf32> -> vector<1x16xf32>
    %cst_83 = arith.constant 2.500000e-01 : f32
    %261 = vector.broadcast %cst_83 : f32 to vector<1x16xf32>
    %262 = arith.mulf %260, %261 : vector<1x16xf32>
    %cst_84 = arith.constant 1.000000e+00 : f32
    %263 = vector.broadcast %cst_84 : f32 to vector<1x16xf32>
    %264 = arith.subf %263, %109 : vector<1x16xf32>
    %265 = arith.mulf %262, %264 : vector<1x16xf32>
    %cst_85 = arith.constant -9.999900e+04 : f32
    %266 = vector.broadcast %cst_85 : f32 to vector<1x16xf32>
    %267 = arith.mulf %109, %266 : vector<1x16xf32>
    %268 = arith.addf %265, %267 : vector<1x16xf32>
    %cst_86 = arith.constant dense<0xFF800000> : vector<1xf32>
    %269 = vector.multi_reduction <maximumf>, %268, %cst_86 [1] : vector<1x16xf32> to vector<1xf32>
    %270 = vector.shape_cast %269 : vector<1xf32> to vector<1x1xf32>
    %271 = vector.broadcast %270 : vector<1x1xf32> to vector<1x16xf32>
    %272 = arith.subf %268, %271 : vector<1x16xf32>
    %273 = math.exp %272 : vector<1x16xf32>
    %cst_87 = arith.constant dense<0.000000e+00> : vector<1xf32>
    %274 = vector.multi_reduction <add>, %273, %cst_87 [1] : vector<1x16xf32> to vector<1xf32>
    %275 = vector.shape_cast %274 : vector<1xf32> to vector<1x1xf32>
    %276 = vector.broadcast %275 : vector<1x1xf32> to vector<1x16xf32>
    %277 = arith.divf %273, %276 : vector<1x16xf32>
    %cst_88 = arith.constant dense<0.000000e+00> : vector<1x16xf32>
    %278 = tpu.matmul %277, %238, %cst_88 {dimension_numbers = #tpu.dot_dimension_numbers<[1], [0], [0], [1], [0, 0, 1, 1], [], []>} : vector<1x16xf32>, vector<16x16xf32>, vector<1x16xf32> -> vector<1x16xf32>
    %279 = tpu.concatenate %216, %236, %258, %278 in 1 : vector<1x16xf32>, vector<1x16xf32>, vector<1x16xf32>, vector<1x16xf32> -> vector<1x64xf32>
    %280 = tpu.concatenate %194, %279 in 0 : vector<1x64xf32>, vector<1x64xf32> -> vector<2x64xf32>
    %c0_89 = arith.constant 0 : index
    %c0_90 = arith.constant 0 : index
    %281 = vector.load %arg4[%c0_89, %c0_90] : memref<64x64xf32, #tpu.memory_space<vmem>>, vector<64x64xf32>
    %cst_91 = arith.constant dense<0.000000e+00> : vector<2x64xf32>
    %282 = tpu.matmul %280, %281, %cst_91 {dimension_numbers = #tpu.dot_dimension_numbers<[1], [0], [0], [1], [0, 0, 1, 1], [], []>} : vector<2x64xf32>, vector<64x64xf32>, vector<2x64xf32> -> vector<2x64xf32>
    %283 = arith.addf %282, %0 : vector<2x64xf32>
    %c0_92 = arith.constant 0 : index
    %c0_93 = arith.constant 0 : index
    %284 = vector.load %arg2[%c0_92, %c0_93] : memref<1x64xf32, #tpu.memory_space<vmem>>, vector<1x64xf32>
    %285 = math.absf %283 : vector<2x64xf32>
    %cst_94 = arith.constant dense<0xFF800000> : vector<2xf32>
    %286 = vector.multi_reduction <maximumf>, %285, %cst_94 [1] : vector<2x64xf32> to vector<2xf32>
    %287 = vector.shape_cast %286 : vector<2xf32> to vector<2x1xf32>
    %288 = vector.broadcast %287 : vector<2x1xf32> to vector<2x64xf32>
    %289 = arith.divf %283, %288 : vector<2x64xf32>
    %290 = arith.mulf %289, %289 : vector<2x64xf32>
    %cst_95 = arith.constant dense<0.000000e+00> : vector<2xf32>
    %291 = vector.multi_reduction <add>, %290, %cst_95 [1] : vector<2x64xf32> to vector<2xf32>
    %292 = vector.shape_cast %291 : vector<2xf32> to vector<2x1xf32>
    %cst_96 = arith.constant 6.400000e+01 : f32
    %293 = vector.broadcast %cst_96 : f32 to vector<2x1xf32>
    %294 = arith.divf %292, %293 : vector<2x1xf32>
    %cst_97 = arith.constant 9.99999997E-7 : f32
    %295 = vector.broadcast %cst_97 : f32 to vector<2x1xf32>
    %296 = arith.addf %294, %295 : vector<2x1xf32>
    %297 = math.rsqrt %296 : vector<2x1xf32>
    %298 = vector.broadcast %297 : vector<2x1xf32> to vector<2x64xf32>
    %299 = arith.mulf %289, %298 : vector<2x64xf32>
    %300 = vector.broadcast %284 : vector<1x64xf32> to vector<2x64xf32>
    %301 = arith.mulf %300, %299 : vector<2x64xf32>
    %c0_98 = arith.constant 0 : index
    %c0_99 = arith.constant 0 : index
    %302 = vector.load %arg5[%c0_98, %c0_99] : memref<64x256xf32, #tpu.memory_space<vmem>>, vector<64x256xf32>
    %cst_100 = arith.constant dense<0.000000e+00> : vector<2x256xf32>
    %303 = tpu.matmul %301, %302, %cst_100 {dimension_numbers = #tpu.dot_dimension_numbers<[1], [0], [0], [1], [0, 0, 1, 1], [], []>} : vector<2x64xf32>, vector<64x256xf32>, vector<2x256xf32> -> vector<2x256xf32>
    %304 = vector.extract_strided_slice %303 {offsets = [0, 0], sizes = [2, 128], strides = [1, 1]} : vector<2x256xf32> to vector<2x128xf32>
    %305 = vector.extract_strided_slice %303 {offsets = [0, 128], sizes = [2, 128], strides = [1, 1]} : vector<2x256xf32> to vector<2x128xf32>
    %306 = arith.negf %304 : vector<2x128xf32>
    %307 = math.exp %306 : vector<2x128xf32>
    %cst_101 = arith.constant 1.000000e+00 : f32
    %308 = vector.broadcast %cst_101 : f32 to vector<2x128xf32>
    %309 = arith.addf %308, %307 : vector<2x128xf32>
    %310 = arith.divf %308, %309 : vector<2x128xf32>
    %311 = arith.mulf %304, %310 : vector<2x128xf32>
    %312 = arith.mulf %311, %305 : vector<2x128xf32>
    %c0_102 = arith.constant 0 : index
    %c0_103 = arith.constant 0 : index
    %313 = vector.load %arg6[%c0_102, %c0_103] : memref<128x64xf32, #tpu.memory_space<vmem>>, vector<128x64xf32>
    %cst_104 = arith.constant dense<0.000000e+00> : vector<2x64xf32>
    %314 = tpu.matmul %312, %313, %cst_104 {dimension_numbers = #tpu.dot_dimension_numbers<[1], [0], [0], [1], [0, 0, 1, 1], [], []>} : vector<2x128xf32>, vector<128x64xf32>, vector<2x64xf32> -> vector<2x64xf32>
    %315 = arith.addf %314, %283 : vector<2x64xf32>
    %c0_105 = arith.constant 0 : index
    %c0_106 = arith.constant 0 : index
    %316 = vector.load %arg13[%c0_105, %c0_106] : memref<2x64xf32, #tpu.memory_space<vmem>>, vector<2x64xf32>
    tpu.vector_store %arg13[%c0_105, %c0_106], %315 {strides = array<i32>} : memref<2x64xf32, #tpu.memory_space<vmem>>, vector<2x64xf32>,
    return
  }
}

</mosaic_0001>

<llo_original>
// kernel: tpu_custom_call.1
$region0: #{tpu_custom_call.1}
  #allocation0 [shape = 'u32[]', space=smem, size = 0x4, offset = 0x4, fixed_abs, tag = 'smem constant byte address 0x4 - core index']
  #allocation1 [shape = 'u32[144,128]{1,0:T(1,128)}', space=vmem, size = 0x12000, scoped, tag = 'internal scratch']
  %s0 = inlined_call_operand.vmem [shape: f32[2,64], index: 0, kind: input, shape index: {}]
  %s1 = inlined_call_operand.vmem [shape: f32[1,64], index: 1, kind: input, shape index: {}]
  %s2 = inlined_call_operand.vmem [shape: f32[1,64], index: 2, kind: input, shape index: {}]
  %s3 = inlined_call_operand.vmem [shape: f32[64,128], index: 3, kind: input, shape index: {}]
  %s4 = inlined_call_operand.hbm [shape: f32[64,64], index: 4, kind: input, shape index: {}]
  %s5 = inlined_call_operand.vmem [shape: f32[64,256], index: 5, kind: input, shape index: {}]
  %s6 = inlined_call_operand.vmem [shape: f32[128,64], index: 6, kind: input, shape index: {}]
  %s7 = inlined_call_operand.vmem [shape: f32[2,16], index: 7, kind: input, shape index: {}]
  %s8 = inlined_call_operand.vmem [shape: f32[2,16], index: 8, kind: input, shape index: {}]
  %s9 = inlined_call_operand.vmem [shape: f32[1,16], index: 9, kind: input, shape index: {}]
  %s10 = inlined_call_operand.vmem [shape: f32[16,1], index: 10, kind: input, shape index: {}]
  %s11 = inlined_call_operand.hbm [shape: f32[16,64], index: 11, kind: input, shape index: {}, may-alias: {11,14}]
  %s12 = inlined_call_operand.hbm [shape: f32[16,64], index: 12, kind: input, shape index: {}, may-alias: {12,15}]
  %s13 = inlined_call_operand.hbm [shape: f32[2,64], index: 13, kind: output, shape index: {0}]
  %s14 = inlined_call_operand.hbm [shape: f32[16,64], index: 14, kind: output, shape index: {1}, may-alias: {11,14}]
  %s15 = inlined_call_operand.hbm [shape: f32[16,64], index: 15, kind: output, shape index: {2}, may-alias: {12,15}]
  %16 = xla_tuple %s13, %s14, %s15
  %s17 = sld [smem:[#allocation0]]
  $region90: #{tpu_custom_call.1} parent=0
    _
  %s19 = ssub.s32 1, %s17
  %s20 = scalar_select 0, %s19, %s17
  $region1: #{tpu_custom_call.1} parent=0
    #allocation2 [shape = 'u8[32768]{0}', space=vmem, size = 0x8000, scoped, tag = 'input window, operand 4, single buffered']
    #allocation3 [shape = 's32[1]{0}', space=sflag, size = 0x4, scoped, tag = 'scoped memory for tpu_custom_call.1']
    #allocation4 [shape = 's32[1]{0}', space=sflag, size = 0x4, scoped, tag = 'scoped memory for tpu_custom_call.1']
    #allocation5 [shape = 'u8[8192]{0}', space=vmem, size = 0x2000, scoped, tag = 'input window, operand 11, single buffered']
    #allocation6 [shape = 's32[1]{0}', space=sflag, size = 0x4, scoped, tag = 'scoped memory for tpu_custom_call.1']
    #allocation7 [shape = 'u8[8192]{0}', space=vmem, size = 0x2000, scoped, tag = 'input window, operand 12, single buffered']
    #allocation8 [shape = 'u8[1024]{0}', space=vmem, size = 0x400, scoped, tag = 'output window, operand 0, single buffered']
    #allocation9 [shape = 'u8[8192]{0}', space=vmem, size = 0x2000, scoped, tag = 'output window, operand 1, single buffered']
    #allocation10 [shape = 's32[1]{0}', space=sflag, size = 0x4, scoped, tag = 'scoped memory for tpu_custom_call.1']
    #allocation11 [shape = 'u8[8192]{0}', space=vmem, size = 0x2000, scoped, tag = 'output window, operand 2, single buffered']
    %21 = vsyncpa [#allocation3], 0
    %22 = vsyncpa [#allocation6], 0
    %23 = vsyncpa [#allocation4], 0
    %24 = vsyncpa [#allocation10], 0
    // Predicated region
    $region2: #{tpu_custom_call.1} parent=1 // pred_check
      _
    $region3: #{tpu_custom_call.1} parent=1 // pred_check_branch
      %26 = sbr.rel (0) target = $region5
    $region4: #{tpu_custom_call.1} parent=1 // pred_region
      _
    $region5: #{tpu_custom_call.1} parent=1 // pred_fallthru
      _
    // Predicated region
    $region6: #{tpu_custom_call.1} parent=1 // pred_check
      _
    $region7: #{tpu_custom_call.1} parent=1 // pred_check_branch
      %28 = sbr.rel (0) target = $region9
    $region8: #{tpu_custom_call.1} parent=1 // pred_region
      _
    $region9: #{tpu_custom_call.1} parent=1 // pred_fallthru
      _
    // Predicated region
    $region10: #{tpu_custom_call.1} parent=1 // pred_check
      _
    $region11: #{tpu_custom_call.1} parent=1 // pred_check_branch
      %30 = sbr.rel (0) target = $region13
    $region12: #{tpu_custom_call.1} parent=1 // pred_region
      _
    $region13: #{tpu_custom_call.1} parent=1 // pred_fallthru
      _
    // Predicated region
    $region14: #{tpu_custom_call.1} parent=1 // pred_check
      _
    $region15: #{tpu_custom_call.1} parent=1 // pred_check_branch
      %32 = sbr.rel (0) target = $region17
    $region16: #{tpu_custom_call.1} parent=1 // pred_region
      _
    $region17: #{tpu_custom_call.1} parent=1 // pred_fallthru
      _
    // Predicated region
    $region18: #{tpu_custom_call.1} parent=1 // pred_check
      _
    $region19: #{tpu_custom_call.1} parent=1 // pred_check_branch
      %34 = sbr.rel (0) target = $region21
    $region20: #{tpu_custom_call.1} parent=1 // pred_region
      %s36 = ssub.s32 1024, 1024
      %37 = vsyncadd [#allocation3], %s36
      %s38 = sshll.u32 [#allocation2], 4
      %s39 = int_to_ptr.vmem [resolvable:$true] %s38
      %44 = dma.hbm_to_vmem [thread:$0]  %s4, 1024, %s39, [#allocation3], 128, 128, 8
    $region21: #{tpu_custom_call.1} parent=1 // pred_fallthru
      _
    // Predicated region
    $region22: #{tpu_custom_call.1} parent=1 // pred_check
      _
    $region23: #{tpu_custom_call.1} parent=1 // pred_check_branch
      %46 = sbr.rel (0) target = $region25
    $region24: #{tpu_custom_call.1} parent=1 // pred_region
      _
    $region25: #{tpu_custom_call.1} parent=1 // pred_fallthru
      _
    // Predicated region
    $region26: #{tpu_custom_call.1} parent=1 // pred_check
      _
    $region27: #{tpu_custom_call.1} parent=1 // pred_check_branch
      %48 = sbr.rel (0) target = $region29
    $region28: #{tpu_custom_call.1} parent=1 // pred_region
      _
    $region29: #{tpu_custom_call.1} parent=1 // pred_fallthru
      _
    // Predicated region
    $region30: #{tpu_custom_call.1} parent=1 // pred_check
      _
    $region31: #{tpu_custom_call.1} parent=1 // pred_check_branch
      %50 = sbr.rel (0) target = $region33
    $region32: #{tpu_custom_call.1} parent=1 // pred_region
      _
    $region33: #{tpu_custom_call.1} parent=1 // pred_fallthru
      _
    // Predicated region
    $region34: #{tpu_custom_call.1} parent=1 // pred_check
      _
    $region35: #{tpu_custom_call.1} parent=1 // pred_check_branch
      %52 = sbr.rel (0) target = $region37
    $region36: #{tpu_custom_call.1} parent=1 // pred_region
      _
    $region37: #{tpu_custom_call.1} parent=1 // pred_fallthru
      _
    // Predicated region
    $region38: #{tpu_custom_call.1} parent=1 // pred_check
      _
    $region39: #{tpu_custom_call.1} parent=1 // pred_check_branch
      %54 = sbr.rel (0) target = $region41
    $region40: #{tpu_custom_call.1} parent=1 // pred_region
      _
    $region41: #{tpu_custom_call.1} parent=1 // pred_fallthru
      _
    // Predicated region
    $region42: #{tpu_custom_call.1} parent=1 // pred_check
      _
    $region43: #{tpu_custom_call.1} parent=1 // pred_check_branch
      %56 = sbr.rel (0) target = $region45
    $region44: #{tpu_custom_call.1} parent=1 // pred_region
      _
    $region45: #{tpu_custom_call.1} parent=1 // pred_fallthru
      _
    // Predicated region
    $region46: #{tpu_custom_call.1} parent=1 // pred_check
      _
    $region47: #{tpu_custom_call.1} parent=1 // pred_check_branch
      %58 = sbr.rel (0) target = $region49
    $region48: #{tpu_custom_call.1} parent=1 // pred_region
      %s60 = ssub.s32 256, 256
      %61 = vsyncadd [#allocation6], %s60
      %s62 = sshll.u32 [#allocation5], 4
      %s63 = int_to_ptr.vmem [resolvable:$true] %s62
      %68 = dma.hbm_to_vmem [thread:$0]  %s11, 256, %s63, [#allocation6], 128, 128, 8
    $region49: #{tpu_custom_call.1} parent=1 // pred_fallthru
      _
    // Predicated region
    $region50: #{tpu_custom_call.1} parent=1 // pred_check
      _
    $region51: #{tpu_custom_call.1} parent=1 // pred_check_branch
      %70 = sbr.rel (0) target = $region53
    $region52: #{tpu_custom_call.1} parent=1 // pred_region
      %s72 = ssub.s32 256, 256
      %73 = vsyncadd [#allocation6], %s72
      %s74 = sshll.u32 [#allocation7], 4
      %s75 = int_to_ptr.vmem [resolvable:$true] %s74
      %80 = dma.hbm_to_vmem [thread:$0]  %s12, 256, %s75, [#allocation6], 128, 128, 8
    $region53: #{tpu_custom_call.1} parent=1 // pred_fallthru
      _
    // Predicated region
    $region54: #{tpu_custom_call.1} parent=1 // pred_check
      _
    $region55: #{tpu_custom_call.1} parent=1 // pred_check_branch
      %82 = sbr.rel (0) target = $region57
    $region56: #{tpu_custom_call.1} parent=1 // pred_region
      %83 = dma.done [#allocation3], 1024
    $region57: #{tpu_custom_call.1} parent=1 // pred_fallthru
      _
    // Predicated region
    $region58: #{tpu_custom_call.1} parent=1 // pred_check
      _
    $region59: #{tpu_custom_call.1} parent=1 // pred_check_branch
      %85 = sbr.rel (0) target = $region61
    $region60: #{tpu_custom_call.1} parent=1 // pred_region
      %86 = dma.done [#allocation6], 256
    $region61: #{tpu_custom_call.1} parent=1 // pred_fallthru
      _
    // Predicated region
    $region62: #{tpu_custom_call.1} parent=1 // pred_check
      _
    $region63: #{tpu_custom_call.1} parent=1 // pred_check_branch
      %88 = sbr.rel (0) target = $region65
    $region64: #{tpu_custom_call.1} parent=1 // pred_region
      %89 = dma.done [#allocation6], 256
    $region65: #{tpu_custom_call.1} parent=1 // pred_fallthru
      _
    %v90 = vld [vmem:[%s0] sm:$0x3]
    %v91 = vld [vmem:[%s1] sm:$0x1]
    %v92 = vand.u32 2147483647, %v90
    %vm93 = vcmask 517120
    %v94 = vsel %vm93, %v92, -inf
    %95 = vmax.xlane.f32.xlu0 %v94
    %v96 = vpop.xlane.xlu0 %95
    %v97 = vrcp.pop %v96
    %v98 = vmul.f32 %v90, %v97
    %v99 = vmul.f32 %v98, %v98
    %v100 = vsel %vm93, %v99, 0.0
    %101 = vadd.xlane.f32.xlu0 %v100
    %v102 = vpop.xlane.xlu0 %101
    %v103 = vrcp.pop 64.0
    %v104 = vmul.f32 %v102, %v103
    %v105 = vadd.f32 %v104, 1e-06
    %v106 = vrsqrt.pop %v105
    %v107 = vmul.f32 %v98, %v106
    %v109 = vlaneseq
    %v110 = vshrl.u32 %v109, 7
    %v111 = vsub.s32 0, %v110
    %v112 = vrot.slane %v91, %v111
    %v114 = vmul.f32 %v112, %v107
    %v115 = vld [vmem:[%s3] sm:$0xff]
    %v116 = vld [vmem:[%s3 + $0x8] sm:$0xff]
    %v117 = vld [vmem:[%s3 + $0x10] sm:$0xff]
    %v118 = vld [vmem:[%s3 + $0x18] sm:$0xff]
    %v119 = vld [vmem:[%s3 + $0x20] sm:$0xff]
    %v120 = vld [vmem:[%s3 + $0x28] sm:$0xff]
    %v121 = vld [vmem:[%s3 + $0x30] sm:$0xff]
    %v122 = vld [vmem:[%s3 + $0x38] sm:$0xff]
    %vm123 = vcmask 523264
    %v125 = vsel %vm123, %v114, 0
    %127 = vmatprep.subr.mxu0 0.0
    %128 = vmatpush1.msra.mxu0 %v115
    %129 = vmatprep.subr.mxu0 0.0
    %130 = vmatpush1.msra.mxu0 %v116
    %131 = vmatprep.subr.mxu0 0.0
    %132 = vmatpush1.msra.mxu0 %v117
    %133 = vmatprep.subr.mxu0 0.0
    %134 = vmatpush1.msra.mxu0 %v118
    %135 = vmatprep.subr.mxu0 0.0
    %136 = vmatpush1.msra.mxu0 %v119
    %137 = vmatprep.subr.mxu0 0.0
    %138 = vmatpush1.msra.mxu0 %v120
    %139 = vmatprep.subr.mxu0 0.0
    %140 = vmatpush1.msra.mxu0 %v121
    %141 = vmatprep.subr.mxu0 0.0
    %142 = vmatpush1.msra.mxu0 %v122
    %143 = vmatprep.subr.mxu0 0.0
    %144 = vmatpush1.msra.mxu0 0.0
    %145 = vmatprep.subr.mxu0 0.0
    %146 = vmatpush1.msra.mxu0 0.0
    %147 = vmatprep.subr.mxu0 0.0
    %148 = vmatpush1.msra.mxu0 0.0
    %149 = vmatprep.subr.mxu0 0.0
    %150 = vmatpush1.msra.mxu0 0.0
    %151 = vmatprep.subr.mxu0 0.0
    %152 = vmatpush1.msra.mxu0 0.0
    %153 = vmatprep.subr.mxu0 0.0
    %154 = vmatpush1.msra.mxu0 0.0
    %155 = vmatprep.subr.mxu0 0.0
    %156 = vmatpush1.msra.mxu0 0.0
    %157 = vmatprep.subr.mxu0 0.0
    %158 = vmatpush1.msra.mxu0 0.0
    %159 = vmatprep.subr.mxu0 0.0
    %160 = vmatpush1.msra.mxu0 0.0
    %161 = vmatprep.subr.mxu0 0.0
    %162 = vmatpush1.msra.mxu0 0.0
    %163 = vmatprep.subr.mxu0 0.0
    %164 = vmatpush1.msra.mxu0 0.0
    %165 = vmatprep.subr.mxu0 0.0
    %166 = vmatpush1.msra.mxu0 0.0
    %167 = vmatprep.subr.mxu0 0.0
    %168 = vmatpush1.msra.mxu0 0.0
    %169 = vmatprep.subr.mxu0 0.0
    %170 = vmatpush1.msra.mxu0 0.0
    %171 = vmatprep.subr.mxu0 0.0
    %172 = vmatpush1.msra.mxu0 0.0
    %173 = vmatprep.subr.mxu0 0.0
    %174 = vmatpush1.msra.mxu0 0.0
    %175 = vmatprep.subr.mxu0 0.0
    %176 = vmatpush1.msra.mxu0 0.0
    %177 = vmatprep.subr.mxu0 0.0
    %178 = vmatpush1.msra.mxu0 0.0
    %179 = vmatprep.subr.mxu0 0.0
    %180 = vmatpush1.msra.mxu0 0.0
    %181 = vmatprep.subr.mxu0 0.0
    %182 = vmatpush1.msra.mxu0 0.0
    %183 = vmatprep.subr.mxu0 0.0
    %184 = vmatpush1.msra.mxu0 0.0
    %185 = vmatprep.subr.mxu0 0.0
    %186 = vmatpush1.msra.mxu0 0.0
    %187 = vmatprep.subr.mxu0 0.0
    %188 = vmatpush1.msra.mxu0 0.0
    %189 = vmatprep.subr.mxu0 0.0
    %190 = vmatpush1.msra.mxu0 0.0
    %191 = vmatprep.mubr.f32.mxu0 0.0
    %192 = vmatmul.mubr.f32.gmra.mrb[0].mxu0 %v125
    %v193 = vpop.f32.mrb[0].mxu0
    %v194 = vadd.f32 0.0, %v193
    %v195 = vpop.f32.mrb[0].mxu0
    %196 = vdwg.mxu0
    %v197 = vld [vmem:[%s7] sm:$0x3]
    %v198 = vld [vmem:[%s8] sm:$0x3]
    %v199 = vsub.f32 0.0, %v194
    %201 = vrot.lane.b32.xlu0 %v199, 120
    %v202 = vpop.permute.xlu0 %201
    %205 = vrot.lane.b32.xlu0 %v194, 8
    %v206 = vpop.permute.xlu0 %205
    %vm208 = vcmask 64512
    %v209 = vsel %vm208, %v202, %v206
    %v210 = vmul.f32 %v194, %v197
    %v211 = vmul.f32 %v209, %v198
    %v212 = vadd.f32 %v210, %v211
    %213 = vrot.lane.b32.xlu0 %v199, 104
    %v214 = vpop.permute.xlu0 %213
    %216 = vrot.lane.b32.xlu0 %v194, 120
    %v217 = vpop.permute.xlu0 %216
    %v219 = vsel %vm208, %v214, %v217
    %221 = vrot.lane.b32.xlu0 %v197, 16
    %v222 = vpop.permute.xlu0 %221
    %v224 = vmul.f32 %v194, %v222
    %v225 = vmul.f32 %v219, %v198
    %227 = vrot.lane.b32.xlu0 %v225, 16
    %v228 = vpop.permute.xlu0 %227
    %v230 = vadd.f32 %v224, %v228
    %231 = vrot.lane.b32.xlu0 %v199, 88
    %v232 = vpop.permute.xlu0 %231
    %234 = vrot.lane.b32.xlu0 %v194, 104
    %v235 = vpop.permute.xlu0 %234
    %v237 = vsel %vm208, %v232, %v235
    %238 = vrot.lane.b32.xlu0 %v197, 32
    %v239 = vpop.permute.xlu0 %238
    %v241 = vmul.f32 %v194, %v239
    %v242 = vmul.f32 %v237, %v198
    %244 = vrot.lane.b32.xlu0 %v242, 32
    %v245 = vpop.permute.xlu0 %244
    %v247 = vadd.f32 %v241, %v245
    %248 = vrot.lane.b32.xlu0 %v199, 72
    %v249 = vpop.permute.xlu0 %248
    %251 = vrot.lane.b32.xlu0 %v194, 88
    %v252 = vpop.permute.xlu0 %251
    %v254 = vsel %vm208, %v249, %v252
    %255 = vrot.lane.b32.xlu0 %v197, 48
    %v256 = vpop.permute.xlu0 %255
    %v258 = vmul.f32 %v194, %v256
    %v259 = vmul.f32 %v254, %v198
    %261 = vrot.lane.b32.xlu0 %v259, 48
    %v262 = vpop.permute.xlu0 %261
    %v264 = vadd.f32 %v258, %v262
    %vm265 = vcmask 130048
    %v266 = vsel %vm265, %v212, %v230
    %vm267 = vcmask 261120
    %v268 = vsel %vm267, %v266, %v247
    %vm269 = vcmask 392192
    %v270 = vsel %vm269, %v268, %v264
    %271 = vrot.lane.b32.xlu0 %v199, 56
    %v272 = vpop.permute.xlu0 %271
    %274 = vrot.lane.b32.xlu0 %v194, 72
    %v275 = vpop.permute.xlu0 %274
    %v277 = vsel %vm208, %v272, %v275
    %278 = vrot.lane.b32.xlu0 %v197, 64
    %v279 = vpop.permute.xlu0 %278
    %v281 = vmul.f32 %v194, %v279
    %v282 = vmul.f32 %v277, %v198
    %284 = vrot.lane.b32.xlu0 %v282, 64
    %v285 = vpop.permute.xlu0 %284
    %v287 = vadd.f32 %v281, %v285
    %288 = vrot.lane.b32.xlu0 %v199, 40
    %v289 = vpop.permute.xlu0 %288
    %291 = vrot.lane.b32.xlu0 %v194, 56
    %v292 = vpop.permute.xlu0 %291
    %v294 = vsel %vm208, %v289, %v292
    %295 = vrot.lane.b32.xlu0 %v197, 80
    %v296 = vpop.permute.xlu0 %295
    %v298 = vmul.f32 %v194, %v296
    %v299 = vmul.f32 %v294, %v198
    %301 = vrot.lane.b32.xlu0 %v299, 80
    %v302 = vpop.permute.xlu0 %301
    %v304 = vadd.f32 %v298, %v302
    %306 = vrot.lane.b32.xlu0 %v287, 64
    %v307 = vpop.permute.xlu0 %306
    %310 = vrot.lane.b32.xlu0 %v304, 64
    %v311 = vpop.permute.xlu0 %310
    %v313 = vsel %vm265, %v307, %v311
    %v315 = vrot.slane %v313, 1
    %316 = vrot.lane.b32.xlu0 %v315, 32
    %v317 = vpop.permute.xlu0 %316
    %v319 = vsel %vm267, %v313, %v317
    %320 = vrot.lane.b32.xlu0 %v194, 32
    %v321 = vpop.permute.xlu0 %320
    %v323 = vrot.slane %v194, 1
    %324 = vrot.lane.b32.xlu0 %v323, 64
    %v325 = vpop.permute.xlu0 %324
    %v327 = vsel %vm267, %v321, %v325
    %v328 = vld [vmem:[%s10] sm:$0xff]
    %v329 = vld [vmem:[%s10 + $0x8] sm:$0xff]
    %v330 = vld [vmem:[#allocation5] sm:$0xff]
    %v331 = vld [vmem:[#allocation5 + $0x8] sm:$0xff]
    %v332 = vsub.f32 1.0, %v328
    %v333 = vsub.f32 1.0, %v329
    %335 = vset.pattern.permute.xlu0 0
    %336 = vperm.xlu0 %335, %v332
    %v337 = vpop.permute.xlu0 %336
    %340 = vset.pattern.permute.xlu0 0
    %341 = vperm.xlu0 %340, %v333
    %v342 = vpop.permute.xlu0 %341
    %v344 = vmul.f32 %v330, %v337
    %v345 = vmul.f32 %v331, %v342
    %v346 = vlaneseq
    %v347 = vshrl.u32 %v346, 7
    %v348 = vsub.s32 0, %v347
    %v349 = vrot.slane %v319, %v348
    %351 = vset.pattern.permute.xlu0 0
    %352 = vperm.xlu0 %351, %v328
    %v353 = vpop.permute.xlu0 %352
    %356 = vset.pattern.permute.xlu0 0
    %357 = vperm.xlu0 %356, %v329
    %v358 = vpop.permute.xlu0 %357
    %v360 = vmul.f32 %v349, %v353
    %v361 = vmul.f32 %v349, %v358
    %v362 = vadd.f32 %v344, %v360
    %v363 = vadd.f32 %v345, %v361
    %v364 = vld [vmem:[#allocation7] sm:$0xff]
    %v365 = vld [vmem:[#allocation7 + $0x8] sm:$0xff]
    %v366 = vmul.f32 %v364, %v337
    %v367 = vmul.f32 %v365, %v342
    %v368 = vlaneseq
    %v369 = vshrl.u32 %v368, 7
    %v370 = vsub.s32 0, %v369
    %v371 = vrot.slane %v327, %v370
    %v372 = vmul.f32 %v371, %v353
    %v373 = vmul.f32 %v371, %v358
    %v374 = vadd.f32 %v366, %v372
    %v375 = vadd.f32 %v367, %v373
    %376 = vst.msk [vmem:[#allocation9] sm:$0xff] %vm123, %v362
    %377 = vst.msk [vmem:[#allocation9 + $0x8] sm:$0xff] %vm123, %v363
    %378 = vst.msk [vmem:[#allocation11] sm:$0xff] %vm123, %v374
    %379 = vst.msk [vmem:[#allocation11 + $0x8] sm:$0xff] %vm123, %v375
    %v380 = vld [vmem:[%s9] sm:$0x1]
    %v382 = vsel %vm265, %v270, 0
    %v385 = vsel %vm265, %v362, 0
    %v388 = vsel %vm265, %v363, 0
    %390 = vmatprep.subr.mxu0 0.0
    %391 = vmatpush1.xpose.msra.mxu0 %v385
    %392 = vmatprep.subr.mxu0 0.0
    %393 = vmatpush1.xpose.msra.mxu0 %v388
    %394 = vmatprep.subr.mxu0 0.0
    %395 = vmatpush1.xpose.msra.mxu0 0.0
    %396 = vmatprep.subr.mxu0 0.0
    %397 = vmatpush1.xpose.msra.mxu0 0.0
    %398 = vmatprep.subr.mxu0 0.0
    %399 = vmatpush1.xpose.msra.mxu0 0.0
    %400 = vmatprep.subr.mxu0 0.0
    %401 = vmatpush1.xpose.msra.mxu0 0.0
    %402 = vmatprep.subr.mxu0 0.0
    %403 = vmatpush1.xpose.msra.mxu0 0.0
    %404 = vmatprep.subr.mxu0 0.0
    %405 = vmatpush1.xpose.msra.mxu0 0.0
    %406 = vmatprep.subr.mxu0 0.0
    %407 = vmatpush1.xpose.msra.mxu0 0.0
    %408 = vmatprep.subr.mxu0 0.0
    %409 = vmatpush1.xpose.msra.mxu0 0.0
    %410 = vmatprep.subr.mxu0 0.0
    %411 = vmatpush1.xpose.msra.mxu0 0.0
    %412 = vmatprep.subr.mxu0 0.0
    %413 = vmatpush1.xpose.msra.mxu0 0.0
    %414 = vmatprep.subr.mxu0 0.0
    %415 = vmatpush1.xpose.msra.mxu0 0.0
    %416 = vmatprep.subr.mxu0 0.0
    %417 = vmatpush1.xpose.msra.mxu0 0.0
    %418 = vmatprep.subr.mxu0 0.0
    %419 = vmatpush1.xpose.msra.mxu0 0.0
    %420 = vmatprep.subr.mxu0 0.0
    %421 = vmatpush1.xpose.msra.mxu0 0.0
    %422 = vmatprep.subr.mxu0 0.0
    %423 = vmatpush1.xpose.msra.mxu0 0.0
    %424 = vmatprep.subr.mxu0 0.0
    %425 = vmatpush1.xpose.msra.mxu0 0.0
    %426 = vmatprep.subr.mxu0 0.0
    %427 = vmatpush1.xpose.msra.mxu0 0.0
    %428 = vmatprep.subr.mxu0 0.0
    %429 = vmatpush1.xpose.msra.mxu0 0.0
    %430 = vmatprep.subr.mxu0 0.0
    %431 = vmatpush1.xpose.msra.mxu0 0.0
    %432 = vmatprep.subr.mxu0 0.0
    %433 = vmatpush1.xpose.msra.mxu0 0.0
    %434 = vmatprep.subr.mxu0 0.0
    %435 = vmatpush1.xpose.msra.mxu0 0.0
    %436 = vmatprep.subr.mxu0 0.0
    %437 = vmatpush1.xpose.msra.mxu0 0.0
    %438 = vmatprep.subr.mxu0 0.0
    %439 = vmatpush1.xpose.msra.mxu0 0.0
    %440 = vmatprep.subr.mxu0 0.0
    %441 = vmatpush1.xpose.msra.mxu0 0.0
    %442 = vmatprep.subr.mxu0 0.0
    %443 = vmatpush1.xpose.msra.mxu0 0.0
    %444 = vmatprep.subr.mxu0 0.0
    %445 = vmatpush1.xpose.msra.mxu0 0.0
    %446 = vmatprep.subr.mxu0 0.0
    %447 = vmatpush1.xpose.msra.mxu0 0.0
    %448 = vmatprep.subr.mxu0 0.0
    %449 = vmatpush1.xpose.msra.mxu0 0.0
    %450 = vmatprep.subr.mxu0 0.0
    %451 = vmatpush1.xpose.msra.mxu0 0.0
    %452 = vmatprep.subr.mxu0 0.0
    %453 = vmatpush1.xpose.msra.mxu0 0.0
    %454 = vmatprep.mubr.f32.mxu0 0.0
    %455 = vmatmul.mubr.f32.gmra.mrb[0].mxu0 %v382
    %v456 = vpop.f32.mrb[0].mxu0
    %v457 = vadd.f32 0.0, %v456
    %v458 = vpop.f32.mrb[0].mxu0
    %459 = vdwg.mxu0
    %v460 = vmul.f32 %v457, 0.25
    %v461 = vsub.f32 1.0, %v380
    %v462 = vmul.f32 %v460, %v461
    %v463 = vmul.f32 %v380, -99999.0
    %v464 = vadd.f32 %v462, %v463
    %vm465 = vcmask 122880
    %v466 = vsel %vm465, %v464, -inf
    %467 = vmax.xlane.f32.xlu0 %v466
    %v468 = vpop.xlane.xlu0 %467
    %v469 = vsub.f32 %v464, %v468
    %v470 = vmul.f32 %v469, 1.442695
    %v471 = vpow.pop %v470
    %v472 = vsel %vm465, %v471, 0.0
    %473 = vadd.xlane.f32.xlu0 %v472
    %v474 = vpop.xlane.xlu0 %473
    %v475 = vrcp.pop %v474
    %v476 = vmul.f32 %v471, %v475
    %v478 = vsel %vm265, %v476, 0
    %480 = vmatprep.subr.mxu0 0.0
    %481 = vmatpush1.msra.mxu0 %v374
    %482 = vmatprep.subr.mxu0 0.0
    %483 = vmatpush1.msra.mxu0 %v375
    %484 = vmatprep.subr.mxu0 0.0
    %485 = vmatpush1.msra.mxu0 0.0
    %486 = vmatprep.subr.mxu0 0.0
    %487 = vmatpush1.msra.mxu0 0.0
    %488 = vmatprep.subr.mxu0 0.0
    %489 = vmatpush1.msra.mxu0 0.0
    %490 = vmatprep.subr.mxu0 0.0
    %491 = vmatpush1.msra.mxu0 0.0
    %492 = vmatprep.subr.mxu0 0.0
    %493 = vmatpush1.msra.mxu0 0.0
    %494 = vmatprep.subr.mxu0 0.0
    %495 = vmatpush1.msra.mxu0 0.0
    %496 = vmatprep.subr.mxu0 0.0
    %497 = vmatpush1.msra.mxu0 0.0
    %498 = vmatprep.subr.mxu0 0.0
    %499 = vmatpush1.msra.mxu0 0.0
    %500 = vmatprep.subr.mxu0 0.0
    %501 = vmatpush1.msra.mxu0 0.0
    %502 = vmatprep.subr.mxu0 0.0
    %503 = vmatpush1.msra.mxu0 0.0
    %504 = vmatprep.subr.mxu0 0.0
    %505 = vmatpush1.msra.mxu0 0.0
    %506 = vmatprep.subr.mxu0 0.0
    %507 = vmatpush1.msra.mxu0 0.0
    %508 = vmatprep.subr.mxu0 0.0
    %509 = vmatpush1.msra.mxu0 0.0
    %510 = vmatprep.subr.mxu0 0.0
    %511 = vmatpush1.msra.mxu0 0.0
    %512 = vmatprep.subr.mxu0 0.0
    %513 = vmatpush1.msra.mxu0 0.0
    %514 = vmatprep.subr.mxu0 0.0
    %515 = vmatpush1.msra.mxu0 0.0
    %516 = vmatprep.subr.mxu0 0.0
    %517 = vmatpush1.msra.mxu0 0.0
    %518 = vmatprep.subr.mxu0 0.0
    %519 = vmatpush1.msra.mxu0 0.0
    %520 = vmatprep.subr.mxu0 0.0
    %521 = vmatpush1.msra.mxu0 0.0
    %522 = vmatprep.subr.mxu0 0.0
    %523 = vmatpush1.msra.mxu0 0.0
    %524 = vmatprep.subr.mxu0 0.0
    %525 = vmatpush1.msra.mxu0 0.0
    %526 = vmatprep.subr.mxu0 0.0
    %527 = vmatpush1.msra.mxu0 0.0
    %528 = vmatprep.subr.mxu0 0.0
    %529 = vmatpush1.msra.mxu0 0.0
    %530 = vmatprep.subr.mxu0 0.0
    %531 = vmatpush1.msra.mxu0 0.0
    %532 = vmatprep.subr.mxu0 0.0
    %533 = vmatpush1.msra.mxu0 0.0
    %534 = vmatprep.subr.mxu0 0.0
    %535 = vmatpush1.msra.mxu0 0.0
    %536 = vmatprep.subr.mxu0 0.0
    %537 = vmatpush1.msra.mxu0 0.0
    %538 = vmatprep.subr.mxu0 0.0
    %539 = vmatpush1.msra.mxu0 0.0
    %540 = vmatprep.subr.mxu0 0.0
    %541 = vmatpush1.msra.mxu0 0.0
    %542 = vmatprep.subr.mxu0 0.0
    %543 = vmatpush1.msra.mxu0 0.0
    %544 = vmatprep.mubr.f32.mxu0 0.0
    %545 = vmatmul.mubr.f32.gmra.mrb[0].mxu0 %v478
    %v546 = vpop.f32.mrb[0].mxu0
    %v547 = vadd.f32 0.0, %v546
    %v548 = vpop.f32.mrb[0].mxu0
    %549 = vdwg.mxu0
    %550 = vrot.lane.b32.xlu0 %v270, 112
    %v551 = vpop.permute.xlu0 %550
    %v552 = vsel %vm265, %v551, 0
    %554 = vmatprep.subr.mxu0 0.0
    %555 = vmatpush1.xpose.msra.mxu0 %v385
    %556 = vmatprep.subr.mxu0 0.0
    %557 = vmatpush1.xpose.msra.mxu0 %v388
    %558 = vmatprep.subr.mxu0 0.0
    %559 = vmatpush1.xpose.msra.mxu0 0.0
    %560 = vmatprep.subr.mxu0 0.0
    %561 = vmatpush1.xpose.msra.mxu0 0.0
    %562 = vmatprep.subr.mxu0 0.0
    %563 = vmatpush1.xpose.msra.mxu0 0.0
    %564 = vmatprep.subr.mxu0 0.0
    %565 = vmatpush1.xpose.msra.mxu0 0.0
    %566 = vmatprep.subr.mxu0 0.0
    %567 = vmatpush1.xpose.msra.mxu0 0.0
    %568 = vmatprep.subr.mxu0 0.0
    %569 = vmatpush1.xpose.msra.mxu0 0.0
    %570 = vmatprep.subr.mxu0 0.0
    %571 = vmatpush1.xpose.msra.mxu0 0.0
    %572 = vmatprep.subr.mxu0 0.0
    %573 = vmatpush1.xpose.msra.mxu0 0.0
    %574 = vmatprep.subr.mxu0 0.0
    %575 = vmatpush1.xpose.msra.mxu0 0.0
    %576 = vmatprep.subr.mxu0 0.0
    %577 = vmatpush1.xpose.msra.mxu0 0.0
    %578 = vmatprep.subr.mxu0 0.0
    %579 = vmatpush1.xpose.msra.mxu0 0.0
    %580 = vmatprep.subr.mxu0 0.0
    %581 = vmatpush1.xpose.msra.mxu0 0.0
    %582 = vmatprep.subr.mxu0 0.0
    %583 = vmatpush1.xpose.msra.mxu0 0.0
    %584 = vmatprep.subr.mxu0 0.0
    %585 = vmatpush1.xpose.msra.mxu0 0.0
    %586 = vmatprep.subr.mxu0 0.0
    %587 = vmatpush1.xpose.msra.mxu0 0.0
    %588 = vmatprep.subr.mxu0 0.0
    %589 = vmatpush1.xpose.msra.mxu0 0.0
    %590 = vmatprep.subr.mxu0 0.0
    %591 = vmatpush1.xpose.msra.mxu0 0.0
    %592 = vmatprep.subr.mxu0 0.0
    %593 = vmatpush1.xpose.msra.mxu0 0.0
    %594 = vmatprep.subr.mxu0 0.0
    %595 = vmatpush1.xpose.msra.mxu0 0.0
    %596 = vmatprep.subr.mxu0 0.0
    %597 = vmatpush1.xpose.msra.mxu0 0.0
    %598 = vmatprep.subr.mxu0 0.0
    %599 = vmatpush1.xpose.msra.mxu0 0.0
    %600 = vmatprep.subr.mxu0 0.0
    %601 = vmatpush1.xpose.msra.mxu0 0.0
    %602 = vmatprep.subr.mxu0 0.0
    %603 = vmatpush1.xpose.msra.mxu0 0.0
    %604 = vmatprep.subr.mxu0 0.0
    %605 = vmatpush1.xpose.msra.mxu0 0.0
    %606 = vmatprep.subr.mxu0 0.0
    %607 = vmatpush1.xpose.msra.mxu0 0.0
    %608 = vmatprep.subr.mxu0 0.0
    %609 = vmatpush1.xpose.msra.mxu0 0.0
    %610 = vmatprep.subr.mxu0 0.0
    %611 = vmatpush1.xpose.msra.mxu0 0.0
    %612 = vmatprep.subr.mxu0 0.0
    %613 = vmatpush1.xpose.msra.mxu0 0.0
    %614 = vmatprep.subr.mxu0 0.0
    %615 = vmatpush1.xpose.msra.mxu0 0.0
    %616 = vmatprep.subr.mxu0 0.0
    %617 = vmatpush1.xpose.msra.mxu0 0.0
    %618 = vmatprep.mubr.f32.mxu0 0.0
    %619 = vmatmul.mubr.f32.gmra.mrb[0].mxu0 %v552
    %v620 = vpop.f32.mrb[0].mxu0
    %v621 = vadd.f32 0.0, %v620
    %v622 = vpop.f32.mrb[0].mxu0
    %623 = vdwg.mxu0
    %v624 = vmul.f32 %v621, 0.25
    %v625 = vmul.f32 %v624, %v461
    %v626 = vadd.f32 %v625, %v463
    %v627 = vsel %vm465, %v626, -inf
    %628 = vmax.xlane.f32.xlu0 %v627
    %v629 = vpop.xlane.xlu0 %628
    %v630 = vsub.f32 %v626, %v629
    %v631 = vmul.f32 %v630, 1.442695
    %v632 = vpow.pop %v631
    %v633 = vsel %vm465, %v632, 0.0
    %634 = vadd.xlane.f32.xlu0 %v633
    %v635 = vpop.xlane.xlu0 %634
    %v636 = vrcp.pop %v635
    %v637 = vmul.f32 %v632, %v636
    %v639 = vsel %vm265, %v637, 0
    %641 = vmatprep.subr.mxu0 0.0
    %642 = vmatpush1.msra.mxu0 %v374
    %643 = vmatprep.subr.mxu0 0.0
    %644 = vmatpush1.msra.mxu0 %v375
    %645 = vmatprep.subr.mxu0 0.0
    %646 = vmatpush1.msra.mxu0 0.0
    %647 = vmatprep.subr.mxu0 0.0
    %648 = vmatpush1.msra.mxu0 0.0
    %649 = vmatprep.subr.mxu0 0.0
    %650 = vmatpush1.msra.mxu0 0.0
    %651 = vmatprep.subr.mxu0 0.0
    %652 = vmatpush1.msra.mxu0 0.0
    %653 = vmatprep.subr.mxu0 0.0
    %654 = vmatpush1.msra.mxu0 0.0
    %655 = vmatprep.subr.mxu0 0.0
    %656 = vmatpush1.msra.mxu0 0.0
    %657 = vmatprep.subr.mxu0 0.0
    %658 = vmatpush1.msra.mxu0 0.0
    %659 = vmatprep.subr.mxu0 0.0
    %660 = vmatpush1.msra.mxu0 0.0
    %661 = vmatprep.subr.mxu0 0.0
    %662 = vmatpush1.msra.mxu0 0.0
    %663 = vmatprep.subr.mxu0 0.0
    %664 = vmatpush1.msra.mxu0 0.0
    %665 = vmatprep.subr.mxu0 0.0
    %666 = vmatpush1.msra.mxu0 0.0
    %667 = vmatprep.subr.mxu0 0.0
    %668 = vmatpush1.msra.mxu0 0.0
    %669 = vmatprep.subr.mxu0 0.0
    %670 = vmatpush1.msra.mxu0 0.0
    %671 = vmatprep.subr.mxu0 0.0
    %672 = vmatpush1.msra.mxu0 0.0
    %673 = vmatprep.subr.mxu0 0.0
    %674 = vmatpush1.msra.mxu0 0.0
    %675 = vmatprep.subr.mxu0 0.0
    %676 = vmatpush1.msra.mxu0 0.0
    %677 = vmatprep.subr.mxu0 0.0
    %678 = vmatpush1.msra.mxu0 0.0
    %679 = vmatprep.subr.mxu0 0.0
    %680 = vmatpush1.msra.mxu0 0.0
    %681 = vmatprep.subr.mxu0 0.0
    %682 = vmatpush1.msra.mxu0 0.0
    %683 = vmatprep.subr.mxu0 0.0
    %684 = vmatpush1.msra.mxu0 0.0
    %685 = vmatprep.subr.mxu0 0.0
    %686 = vmatpush1.msra.mxu0 0.0
    %687 = vmatprep.subr.mxu0 0.0
    %688 = vmatpush1.msra.mxu0 0.0
    %689 = vmatprep.subr.mxu0 0.0
    %690 = vmatpush1.msra.mxu0 0.0
    %691 = vmatprep.subr.mxu0 0.0
    %692 = vmatpush1.msra.mxu0 0.0
    %693 = vmatprep.subr.mxu0 0.0
    %694 = vmatpush1.msra.mxu0 0.0
    %695 = vmatprep.subr.mxu0 0.0
    %696 = vmatpush1.msra.mxu0 0.0
    %697 = vmatprep.subr.mxu0 0.0
    %698 = vmatpush1.msra.mxu0 0.0
    %699 = vmatprep.subr.mxu0 0.0
    %700 = vmatpush1.msra.mxu0 0.0
    %701 = vmatprep.subr.mxu0 0.0
    %702 = vmatpush1.msra.mxu0 0.0
    %703 = vmatprep.subr.mxu0 0.0
    %704 = vmatpush1.msra.mxu0 0.0
    %705 = vmatprep.mubr.f32.mxu0 0.0
    %706 = vmatmul.mubr.f32.gmra.mrb[0].mxu0 %v639
    %v707 = vpop.f32.mrb[0].mxu0
    %v708 = vadd.f32 0.0, %v707
    %v709 = vpop.f32.mrb[0].mxu0
    %710 = vdwg.mxu0
    %711 = vrot.lane.b32.xlu0 %v270, 96
    %v712 = vpop.permute.xlu0 %711
    %713 = vrot.lane.b32.xlu0 %v362, 112
    %v714 = vpop.permute.xlu0 %713
    %715 = vrot.lane.b32.xlu0 %v363, 112
    %v716 = vpop.permute.xlu0 %715
    %v717 = vsel %vm265, %v712, 0
    %v719 = vsel %vm265, %v714, 0
    %v721 = vsel %vm265, %v716, 0
    %723 = vmatprep.subr.mxu0 0.0
    %724 = vmatpush1.xpose.msra.mxu0 %v719
    %725 = vmatprep.subr.mxu0 0.0
    %726 = vmatpush1.xpose.msra.mxu0 %v721
    %727 = vmatprep.subr.mxu0 0.0
    %728 = vmatpush1.xpose.msra.mxu0 0.0
    %729 = vmatprep.subr.mxu0 0.0
    %730 = vmatpush1.xpose.msra.mxu0 0.0
    %731 = vmatprep.subr.mxu0 0.0
    %732 = vmatpush1.xpose.msra.mxu0 0.0
    %733 = vmatprep.subr.mxu0 0.0
    %734 = vmatpush1.xpose.msra.mxu0 0.0
    %735 = vmatprep.subr.mxu0 0.0
    %736 = vmatpush1.xpose.msra.mxu0 0.0
    %737 = vmatprep.subr.mxu0 0.0
    %738 = vmatpush1.xpose.msra.mxu0 0.0
    %739 = vmatprep.subr.mxu0 0.0
    %740 = vmatpush1.xpose.msra.mxu0 0.0
    %741 = vmatprep.subr.mxu0 0.0
    %742 = vmatpush1.xpose.msra.mxu0 0.0
    %743 = vmatprep.subr.mxu0 0.0
    %744 = vmatpush1.xpose.msra.mxu0 0.0
    %745 = vmatprep.subr.mxu0 0.0
    %746 = vmatpush1.xpose.msra.mxu0 0.0
    %747 = vmatprep.subr.mxu0 0.0
    %748 = vmatpush1.xpose.msra.mxu0 0.0
    %749 = vmatprep.subr.mxu0 0.0
    %750 = vmatpush1.xpose.msra.mxu0 0.0
    %751 = vmatprep.subr.mxu0 0.0
    %752 = vmatpush1.xpose.msra.mxu0 0.0
    %753 = vmatprep.subr.mxu0 0.0
    %754 = vmatpush1.xpose.msra.mxu0 0.0
    %755 = vmatprep.subr.mxu0 0.0
    %756 = vmatpush1.xpose.msra.mxu0 0.0
    %757 = vmatprep.subr.mxu0 0.0
    %758 = vmatpush1.xpose.msra.mxu0 0.0
    %759 = vmatprep.subr.mxu0 0.0
    %760 = vmatpush1.xpose.msra.mxu0 0.0
    %761 = vmatprep.subr.mxu0 0.0
    %762 = vmatpush1.xpose.msra.mxu0 0.0
    %763 = vmatprep.subr.mxu0 0.0
    %764 = vmatpush1.xpose.msra.mxu0 0.0
    %765 = vmatprep.subr.mxu0 0.0
    %766 = vmatpush1.xpose.msra.mxu0 0.0
    %767 = vmatprep.subr.mxu0 0.0
    %768 = vmatpush1.xpose.msra.mxu0 0.0
    %769 = vmatprep.subr.mxu0 0.0
    %770 = vmatpush1.xpose.msra.mxu0 0.0
    %771 = vmatprep.subr.mxu0 0.0
    %772 = vmatpush1.xpose.msra.mxu0 0.0
    %773 = vmatprep.subr.mxu0 0.0
    %774 = vmatpush1.xpose.msra.mxu0 0.0
    %775 = vmatprep.subr.mxu0 0.0
    %776 = vmatpush1.xpose.msra.mxu0 0.0
    %777 = vmatprep.subr.mxu0 0.0
    %778 = vmatpush1.xpose.msra.mxu0 0.0
    %779 = vmatprep.subr.mxu0 0.0
    %780 = vmatpush1.xpose.msra.mxu0 0.0
    %781 = vmatprep.subr.mxu0 0.0
    %782 = vmatpush1.xpose.msra.mxu0 0.0
    %783 = vmatprep.subr.mxu0 0.0
    %784 = vmatpush1.xpose.msra.mxu0 0.0
    %785 = vmatprep.subr.mxu0 0.0
    %786 = vmatpush1.xpose.msra.mxu0 0.0
    %787 = vmatprep.mubr.f32.mxu0 0.0
    %788 = vmatmul.mubr.f32.gmra.mrb[0].mxu0 %v717
    %v789 = vpop.f32.mrb[0].mxu0
    %v790 = vadd.f32 0.0, %v789
    %v791 = vpop.f32.mrb[0].mxu0
    %792 = vdwg.mxu0
    %v793 = vmul.f32 %v790, 0.25
    %v794 = vmul.f32 %v793, %v461
    %v795 = vadd.f32 %v794, %v463
    %v796 = vsel %vm465, %v795, -inf
    %797 = vmax.xlane.f32.xlu0 %v796
    %v798 = vpop.xlane.xlu0 %797
    %v799 = vsub.f32 %v795, %v798
    %v800 = vmul.f32 %v799, 1.442695
    %v801 = vpow.pop %v800
    %v802 = vsel %vm465, %v801, 0.0
    %803 = vadd.xlane.f32.xlu0 %v802
    %v804 = vpop.xlane.xlu0 %803
    %v805 = vrcp.pop %v804
    %v806 = vmul.f32 %v801, %v805
    %809 = vrot.lane.b32.xlu0 %v374, 112
    %v810 = vpop.permute.xlu0 %809
    %811 = vrot.lane.b32.xlu0 %v375, 112
    %v812 = vpop.permute.xlu0 %811
    %v816 = vsel %vm265, %v806, 0
    %818 = vmatprep.subr.mxu0 0.0
    %819 = vmatpush1.msra.mxu0 %v810
    %820 = vmatprep.subr.mxu0 0.0
    %821 = vmatpush1.msra.mxu0 %v812
    %822 = vmatprep.subr.mxu0 0.0
    %823 = vmatpush1.msra.mxu0 0.0
    %824 = vmatprep.subr.mxu0 0.0
    %825 = vmatpush1.msra.mxu0 0.0
    %826 = vmatprep.subr.mxu0 0.0
    %827 = vmatpush1.msra.mxu0 0.0
    %828 = vmatprep.subr.mxu0 0.0
    %829 = vmatpush1.msra.mxu0 0.0
    %830 = vmatprep.subr.mxu0 0.0
    %831 = vmatpush1.msra.mxu0 0.0
    %832 = vmatprep.subr.mxu0 0.0
    %833 = vmatpush1.msra.mxu0 0.0
    %834 = vmatprep.subr.mxu0 0.0
    %835 = vmatpush1.msra.mxu0 0.0
    %836 = vmatprep.subr.mxu0 0.0
    %837 = vmatpush1.msra.mxu0 0.0
    %838 = vmatprep.subr.mxu0 0.0
    %839 = vmatpush1.msra.mxu0 0.0
    %840 = vmatprep.subr.mxu0 0.0
    %841 = vmatpush1.msra.mxu0 0.0
    %842 = vmatprep.subr.mxu0 0.0
    %843 = vmatpush1.msra.mxu0 0.0
    %844 = vmatprep.subr.mxu0 0.0
    %845 = vmatpush1.msra.mxu0 0.0
    %846 = vmatprep.subr.mxu0 0.0
    %847 = vmatpush1.msra.mxu0 0.0
    %848 = vmatprep.subr.mxu0 0.0
    %849 = vmatpush1.msra.mxu0 0.0
    %850 = vmatprep.subr.mxu0 0.0
    %851 = vmatpush1.msra.mxu0 0.0
    %852 = vmatprep.subr.mxu0 0.0
    %853 = vmatpush1.msra.mxu0 0.0
    %854 = vmatprep.subr.mxu0 0.0
    %855 = vmatpush1.msra.mxu0 0.0
    %856 = vmatprep.subr.mxu0 0.0
    %857 = vmatpush1.msra.mxu0 0.0
    %858 = vmatprep.subr.mxu0 0.0
    %859 = vmatpush1.msra.mxu0 0.0
    %860 = vmatprep.subr.mxu0 0.0
    %861 = vmatpush1.msra.mxu0 0.0
    %862 = vmatprep.subr.mxu0 0.0
    %863 = vmatpush1.msra.mxu0 0.0
    %864 = vmatprep.subr.mxu0 0.0
    %865 = vmatpush1.msra.mxu0 0.0
    %866 = vmatprep.subr.mxu0 0.0
    %867 = vmatpush1.msra.mxu0 0.0
    %868 = vmatprep.subr.mxu0 0.0
    %869 = vmatpush1.msra.mxu0 0.0
    %870 = vmatprep.subr.mxu0 0.0
    %871 = vmatpush1.msra.mxu0 0.0
    %872 = vmatprep.subr.mxu0 0.0
    %873 = vmatpush1.msra.mxu0 0.0
    %874 = vmatprep.subr.mxu0 0.0
    %875 = vmatpush1.msra.mxu0 0.0
    %876 = vmatprep.subr.mxu0 0.0
    %877 = vmatpush1.msra.mxu0 0.0
    %878 = vmatprep.subr.mxu0 0.0
    %879 = vmatpush1.msra.mxu0 0.0
    %880 = vmatprep.subr.mxu0 0.0
    %881 = vmatpush1.msra.mxu0 0.0
    %882 = vmatprep.mubr.f32.mxu0 0.0
    %883 = vmatmul.mubr.f32.gmra.mrb[0].mxu0 %v816
    %v884 = vpop.f32.mrb[0].mxu0
    %v885 = vadd.f32 0.0, %v884
    %v886 = vpop.f32.mrb[0].mxu0
    %887 = vdwg.mxu0
    %888 = vrot.lane.b32.xlu0 %v270, 80
    %v889 = vpop.permute.xlu0 %888
    %v890 = vsel %vm265, %v889, 0
    %892 = vmatprep.subr.mxu0 0.0
    %893 = vmatpush1.xpose.msra.mxu0 %v719
    %894 = vmatprep.subr.mxu0 0.0
    %895 = vmatpush1.xpose.msra.mxu0 %v721
    %896 = vmatprep.subr.mxu0 0.0
    %897 = vmatpush1.xpose.msra.mxu0 0.0
    %898 = vmatprep.subr.mxu0 0.0
    %899 = vmatpush1.xpose.msra.mxu0 0.0
    %900 = vmatprep.subr.mxu0 0.0
    %901 = vmatpush1.xpose.msra.mxu0 0.0
    %902 = vmatprep.subr.mxu0 0.0
    %903 = vmatpush1.xpose.msra.mxu0 0.0
    %904 = vmatprep.subr.mxu0 0.0
    %905 = vmatpush1.xpose.msra.mxu0 0.0
    %906 = vmatprep.subr.mxu0 0.0
    %907 = vmatpush1.xpose.msra.mxu0 0.0
    %908 = vmatprep.subr.mxu0 0.0
    %909 = vmatpush1.xpose.msra.mxu0 0.0
    %910 = vmatprep.subr.mxu0 0.0
    %911 = vmatpush1.xpose.msra.mxu0 0.0
    %912 = vmatprep.subr.mxu0 0.0
    %913 = vmatpush1.xpose.msra.mxu0 0.0
    %914 = vmatprep.subr.mxu0 0.0
    %915 = vmatpush1.xpose.msra.mxu0 0.0
    %916 = vmatprep.subr.mxu0 0.0
    %917 = vmatpush1.xpose.msra.mxu0 0.0
    %918 = vmatprep.subr.mxu0 0.0
    %919 = vmatpush1.xpose.msra.mxu0 0.0
    %920 = vmatprep.subr.mxu0 0.0
    %921 = vmatpush1.xpose.msra.mxu0 0.0
    %922 = vmatprep.subr.mxu0 0.0
    %923 = vmatpush1.xpose.msra.mxu0 0.0
    %924 = vmatprep.subr.mxu0 0.0
    %925 = vmatpush1.xpose.msra.mxu0 0.0
    %926 = vmatprep.subr.mxu0 0.0
    %927 = vmatpush1.xpose.msra.mxu0 0.0
    %928 = vmatprep.subr.mxu0 0.0
    %929 = vmatpush1.xpose.msra.mxu0 0.0
    %930 = vmatprep.subr.mxu0 0.0
    %931 = vmatpush1.xpose.msra.mxu0 0.0
    %932 = vmatprep.subr.mxu0 0.0
    %933 = vmatpush1.xpose.msra.mxu0 0.0
    %934 = vmatprep.subr.mxu0 0.0
    %935 = vmatpush1.xpose.msra.mxu0 0.0
    %936 = vmatprep.subr.mxu0 0.0
    %937 = vmatpush1.xpose.msra.mxu0 0.0
    %938 = vmatprep.subr.mxu0 0.0
    %939 = vmatpush1.xpose.msra.mxu0 0.0
    %940 = vmatprep.subr.mxu0 0.0
    %941 = vmatpush1.xpose.msra.mxu0 0.0
    %942 = vmatprep.subr.mxu0 0.0
    %943 = vmatpush1.xpose.msra.mxu0 0.0
    %944 = vmatprep.subr.mxu0 0.0
    %945 = vmatpush1.xpose.msra.mxu0 0.0
    %946 = vmatprep.subr.mxu0 0.0
    %947 = vmatpush1.xpose.msra.mxu0 0.0
    %948 = vmatprep.subr.mxu0 0.0
    %949 = vmatpush1.xpose.msra.mxu0 0.0
    %950 = vmatprep.subr.mxu0 0.0
    %951 = vmatpush1.xpose.msra.mxu0 0.0
    %952 = vmatprep.subr.mxu0 0.0
    %953 = vmatpush1.xpose.msra.mxu0 0.0
    %954 = vmatprep.subr.mxu0 0.0
    %955 = vmatpush1.xpose.msra.mxu0 0.0
    %956 = vmatprep.mubr.f32.mxu0 0.0
    %957 = vmatmul.mubr.f32.gmra.mrb[0].mxu0 %v890
    %v958 = vpop.f32.mrb[0].mxu0
    %v959 = vadd.f32 0.0, %v958
    %v960 = vpop.f32.mrb[0].mxu0
    %961 = vdwg.mxu0
    %v962 = vmul.f32 %v959, 0.25
    %v963 = vmul.f32 %v962, %v461
    %v964 = vadd.f32 %v963, %v463
    %v965 = vsel %vm465, %v964, -inf
    %966 = vmax.xlane.f32.xlu0 %v965
    %v967 = vpop.xlane.xlu0 %966
    %v968 = vsub.f32 %v964, %v967
    %v969 = vmul.f32 %v968, 1.442695
    %v970 = vpow.pop %v969
    %v971 = vsel %vm465, %v970, 0.0
    %972 = vadd.xlane.f32.xlu0 %v971
    %v973 = vpop.xlane.xlu0 %972
    %v974 = vrcp.pop %v973
    %v975 = vmul.f32 %v970, %v974
    %v977 = vsel %vm265, %v975, 0
    %979 = vmatprep.subr.mxu0 0.0
    %980 = vmatpush1.msra.mxu0 %v810
    %981 = vmatprep.subr.mxu0 0.0
    %982 = vmatpush1.msra.mxu0 %v812
    %983 = vmatprep.subr.mxu0 0.0
    %984 = vmatpush1.msra.mxu0 0.0
    %985 = vmatprep.subr.mxu0 0.0
    %986 = vmatpush1.msra.mxu0 0.0
    %987 = vmatprep.subr.mxu0 0.0
    %988 = vmatpush1.msra.mxu0 0.0
    %989 = vmatprep.subr.mxu0 0.0
    %990 = vmatpush1.msra.mxu0 0.0
    %991 = vmatprep.subr.mxu0 0.0
    %992 = vmatpush1.msra.mxu0 0.0
    %993 = vmatprep.subr.mxu0 0.0
    %994 = vmatpush1.msra.mxu0 0.0
    %995 = vmatprep.subr.mxu0 0.0
    %996 = vmatpush1.msra.mxu0 0.0
    %997 = vmatprep.subr.mxu0 0.0
    %998 = vmatpush1.msra.mxu0 0.0
    %999 = vmatprep.subr.mxu0 0.0
    %1000 = vmatpush1.msra.mxu0 0.0
    %1001 = vmatprep.subr.mxu0 0.0
    %1002 = vmatpush1.msra.mxu0 0.0
    %1003 = vmatprep.subr.mxu0 0.0
    %1004 = vmatpush1.msra.mxu0 0.0
    %1005 = vmatprep.subr.mxu0 0.0
    %1006 = vmatpush1.msra.mxu0 0.0
    %1007 = vmatprep.subr.mxu0 0.0
    %1008 = vmatpush1.msra.mxu0 0.0
    %1009 = vmatprep.subr.mxu0 0.0
    %1010 = vmatpush1.msra.mxu0 0.0
    %1011 = vmatprep.subr.mxu0 0.0
    %1012 = vmatpush1.msra.mxu0 0.0
    %1013 = vmatprep.subr.mxu0 0.0
    %1014 = vmatpush1.msra.mxu0 0.0
    %1015 = vmatprep.subr.mxu0 0.0
    %1016 = vmatpush1.msra.mxu0 0.0
    %1017 = vmatprep.subr.mxu0 0.0
    %1018 = vmatpush1.msra.mxu0 0.0
    %1019 = vmatprep.subr.mxu0 0.0
    %1020 = vmatpush1.msra.mxu0 0.0
    %1021 = vmatprep.subr.mxu0 0.0
    %1022 = vmatpush1.msra.mxu0 0.0
    %1023 = vmatprep.subr.mxu0 0.0
    %1024 = vmatpush1.msra.mxu0 0.0
    %1025 = vmatprep.subr.mxu0 0.0
    %1026 = vmatpush1.msra.mxu0 0.0
    %1027 = vmatprep.subr.mxu0 0.0
    %1028 = vmatpush1.msra.mxu0 0.0
    %1029 = vmatprep.subr.mxu0 0.0
    %1030 = vmatpush1.msra.mxu0 0.0
    %1031 = vmatprep.subr.mxu0 0.0
    %1032 = vmatpush1.msra.mxu0 0.0
    %1033 = vmatprep.subr.mxu0 0.0
    %1034 = vmatpush1.msra.mxu0 0.0
    %1035 = vmatprep.subr.mxu0 0.0
    %1036 = vmatpush1.msra.mxu0 0.0
    %1037 = vmatprep.subr.mxu0 0.0
    %1038 = vmatpush1.msra.mxu0 0.0
    %1039 = vmatprep.subr.mxu0 0.0
    %1040 = vmatpush1.msra.mxu0 0.0
    %1041 = vmatprep.subr.mxu0 0.0
    %1042 = vmatpush1.msra.mxu0 0.0
    %1043 = vmatprep.mubr.f32.mxu0 0.0
    %1044 = vmatmul.mubr.f32.gmra.mrb[0].mxu0 %v977
    %v1045 = vpop.f32.mrb[0].mxu0
    %v1046 = vadd.f32 0.0, %v1045
    %v1047 = vpop.f32.mrb[0].mxu0
    %1048 = vdwg.mxu0
    %1050 = vrot.lane.b32.xlu0 %v708, 16
    %v1051 = vpop.permute.xlu0 %1050
    %1054 = vrot.lane.b32.xlu0 %v885, 32
    %v1055 = vpop.permute.xlu0 %1054
    %1058 = vrot.lane.b32.xlu0 %v1046, 48
    %v1059 = vpop.permute.xlu0 %1058
    %v1061 = vsel %vm265, %v547, %v1051
    %v1062 = vsel %vm267, %v1061, %v1055
    %v1063 = vsel %vm269, %v1062, %v1059
    %v1064 = vrot.slane %v270, 1
    %1065 = vrot.lane.b32.xlu0 %v362, 96
    %v1066 = vpop.permute.xlu0 %1065
    %1067 = vrot.lane.b32.xlu0 %v363, 96
    %v1068 = vpop.permute.xlu0 %1067
    %v1069 = vsel %vm265, %v1064, 0
    %v1071 = vsel %vm265, %v1066, 0
    %v1073 = vsel %vm265, %v1068, 0
    %1075 = vmatprep.subr.mxu0 0.0
    %1076 = vmatpush1.xpose.msra.mxu0 %v1071
    %1077 = vmatprep.subr.mxu0 0.0
    %1078 = vmatpush1.xpose.msra.mxu0 %v1073
    %1079 = vmatprep.subr.mxu0 0.0
    %1080 = vmatpush1.xpose.msra.mxu0 0.0
    %1081 = vmatprep.subr.mxu0 0.0
    %1082 = vmatpush1.xpose.msra.mxu0 0.0
    %1083 = vmatprep.subr.mxu0 0.0
    %1084 = vmatpush1.xpose.msra.mxu0 0.0
    %1085 = vmatprep.subr.mxu0 0.0
    %1086 = vmatpush1.xpose.msra.mxu0 0.0
    %1087 = vmatprep.subr.mxu0 0.0
    %1088 = vmatpush1.xpose.msra.mxu0 0.0
    %1089 = vmatprep.subr.mxu0 0.0
    %1090 = vmatpush1.xpose.msra.mxu0 0.0
    %1091 = vmatprep.subr.mxu0 0.0
    %1092 = vmatpush1.xpose.msra.mxu0 0.0
    %1093 = vmatprep.subr.mxu0 0.0
    %1094 = vmatpush1.xpose.msra.mxu0 0.0
    %1095 = vmatprep.subr.mxu0 0.0
    %1096 = vmatpush1.xpose.msra.mxu0 0.0
    %1097 = vmatprep.subr.mxu0 0.0
    %1098 = vmatpush1.xpose.msra.mxu0 0.0
    %1099 = vmatprep.subr.mxu0 0.0
    %1100 = vmatpush1.xpose.msra.mxu0 0.0
    %1101 = vmatprep.subr.mxu0 0.0
    %1102 = vmatpush1.xpose.msra.mxu0 0.0
    %1103 = vmatprep.subr.mxu0 0.0
    %1104 = vmatpush1.xpose.msra.mxu0 0.0
    %1105 = vmatprep.subr.mxu0 0.0
    %1106 = vmatpush1.xpose.msra.mxu0 0.0
    %1107 = vmatprep.subr.mxu0 0.0
    %1108 = vmatpush1.xpose.msra.mxu0 0.0
    %1109 = vmatprep.subr.mxu0 0.0
    %1110 = vmatpush1.xpose.msra.mxu0 0.0
    %1111 = vmatprep.subr.mxu0 0.0
    %1112 = vmatpush1.xpose.msra.mxu0 0.0
    %1113 = vmatprep.subr.mxu0 0.0
    %1114 = vmatpush1.xpose.msra.mxu0 0.0
    %1115 = vmatprep.subr.mxu0 0.0
    %1116 = vmatpush1.xpose.msra.mxu0 0.0
    %1117 = vmatprep.subr.mxu0 0.0
    %1118 = vmatpush1.xpose.msra.mxu0 0.0
    %1119 = vmatprep.subr.mxu0 0.0
    %1120 = vmatpush1.xpose.msra.mxu0 0.0
    %1121 = vmatprep.subr.mxu0 0.0
    %1122 = vmatpush1.xpose.msra.mxu0 0.0
    %1123 = vmatprep.subr.mxu0 0.0
    %1124 = vmatpush1.xpose.msra.mxu0 0.0
    %1125 = vmatprep.subr.mxu0 0.0
    %1126 = vmatpush1.xpose.msra.mxu0 0.0
    %1127 = vmatprep.subr.mxu0 0.0
    %1128 = vmatpush1.xpose.msra.mxu0 0.0
    %1129 = vmatprep.subr.mxu0 0.0
    %1130 = vmatpush1.xpose.msra.mxu0 0.0
    %1131 = vmatprep.subr.mxu0 0.0
    %1132 = vmatpush1.xpose.msra.mxu0 0.0
    %1133 = vmatprep.subr.mxu0 0.0
    %1134 = vmatpush1.xpose.msra.mxu0 0.0
    %1135 = vmatprep.subr.mxu0 0.0
    %1136 = vmatpush1.xpose.msra.mxu0 0.0
    %1137 = vmatprep.subr.mxu0 0.0
    %1138 = vmatpush1.xpose.msra.mxu0 0.0
    %1139 = vmatprep.mubr.f32.mxu0 0.0
    %1140 = vmatmul.mubr.f32.gmra.mrb[0].mxu0 %v1069
    %v1141 = vpop.f32.mrb[0].mxu0
    %v1142 = vadd.f32 0.0, %v1141
    %v1143 = vpop.f32.mrb[0].mxu0
    %1144 = vdwg.mxu0
    %v1145 = vmul.f32 %v1142, 0.25
    %v1146 = vmul.f32 %v1145, %v461
    %v1147 = vadd.f32 %v1146, %v463
    %v1148 = vsel %vm465, %v1147, -inf
    %1149 = vmax.xlane.f32.xlu0 %v1148
    %v1150 = vpop.xlane.xlu0 %1149
    %v1151 = vsub.f32 %v1147, %v1150
    %v1152 = vmul.f32 %v1151, 1.442695
    %v1153 = vpow.pop %v1152
    %v1154 = vsel %vm465, %v1153, 0.0
    %1155 = vadd.xlane.f32.xlu0 %v1154
    %v1156 = vpop.xlane.xlu0 %1155
    %v1157 = vrcp.pop %v1156
    %v1158 = vmul.f32 %v1153, %v1157
    %1159 = vrot.lane.b32.xlu0 %v374, 96
    %v1160 = vpop.permute.xlu0 %1159
    %1161 = vrot.lane.b32.xlu0 %v375, 96
    %v1162 = vpop.permute.xlu0 %1161
    %v1166 = vsel %vm265, %v1158, 0
    %1168 = vmatprep.subr.mxu0 0.0
    %1169 = vmatpush1.msra.mxu0 %v1160
    %1170 = vmatprep.subr.mxu0 0.0
    %1171 = vmatpush1.msra.mxu0 %v1162
    %1172 = vmatprep.subr.mxu0 0.0
    %1173 = vmatpush1.msra.mxu0 0.0
    %1174 = vmatprep.subr.mxu0 0.0
    %1175 = vmatpush1.msra.mxu0 0.0
    %1176 = vmatprep.subr.mxu0 0.0
    %1177 = vmatpush1.msra.mxu0 0.0
    %1178 = vmatprep.subr.mxu0 0.0
    %1179 = vmatpush1.msra.mxu0 0.0
    %1180 = vmatprep.subr.mxu0 0.0
    %1181 = vmatpush1.msra.mxu0 0.0
    %1182 = vmatprep.subr.mxu0 0.0
    %1183 = vmatpush1.msra.mxu0 0.0
    %1184 = vmatprep.subr.mxu0 0.0
    %1185 = vmatpush1.msra.mxu0 0.0
    %1186 = vmatprep.subr.mxu0 0.0
    %1187 = vmatpush1.msra.mxu0 0.0
    %1188 = vmatprep.subr.mxu0 0.0
    %1189 = vmatpush1.msra.mxu0 0.0
    %1190 = vmatprep.subr.mxu0 0.0
    %1191 = vmatpush1.msra.mxu0 0.0
    %1192 = vmatprep.subr.mxu0 0.0
    %1193 = vmatpush1.msra.mxu0 0.0
    %1194 = vmatprep.subr.mxu0 0.0
    %1195 = vmatpush1.msra.mxu0 0.0
    %1196 = vmatprep.subr.mxu0 0.0
    %1197 = vmatpush1.msra.mxu0 0.0
    %1198 = vmatprep.subr.mxu0 0.0
    %1199 = vmatpush1.msra.mxu0 0.0
    %1200 = vmatprep.subr.mxu0 0.0
    %1201 = vmatpush1.msra.mxu0 0.0
    %1202 = vmatprep.subr.mxu0 0.0
    %1203 = vmatpush1.msra.mxu0 0.0
    %1204 = vmatprep.subr.mxu0 0.0
    %1205 = vmatpush1.msra.mxu0 0.0
    %1206 = vmatprep.subr.mxu0 0.0
    %1207 = vmatpush1.msra.mxu0 0.0
    %1208 = vmatprep.subr.mxu0 0.0
    %1209 = vmatpush1.msra.mxu0 0.0
    %1210 = vmatprep.subr.mxu0 0.0
    %1211 = vmatpush1.msra.mxu0 0.0
    %1212 = vmatprep.subr.mxu0 0.0
    %1213 = vmatpush1.msra.mxu0 0.0
    %1214 = vmatprep.subr.mxu0 0.0
    %1215 = vmatpush1.msra.mxu0 0.0
    %1216 = vmatprep.subr.mxu0 0.0
    %1217 = vmatpush1.msra.mxu0 0.0
    %1218 = vmatprep.subr.mxu0 0.0
    %1219 = vmatpush1.msra.mxu0 0.0
    %1220 = vmatprep.subr.mxu0 0.0
    %1221 = vmatpush1.msra.mxu0 0.0
    %1222 = vmatprep.subr.mxu0 0.0
    %1223 = vmatpush1.msra.mxu0 0.0
    %1224 = vmatprep.subr.mxu0 0.0
    %1225 = vmatpush1.msra.mxu0 0.0
    %1226 = vmatprep.subr.mxu0 0.0
    %1227 = vmatpush1.msra.mxu0 0.0
    %1228 = vmatprep.subr.mxu0 0.0
    %1229 = vmatpush1.msra.mxu0 0.0
    %1230 = vmatprep.subr.mxu0 0.0
    %1231 = vmatpush1.msra.mxu0 0.0
    %1232 = vmatprep.mubr.f32.mxu0 0.0
    %1233 = vmatmul.mubr.f32.gmra.mrb[0].mxu0 %v1166
    %v1234 = vpop.f32.mrb[0].mxu0
    %v1235 = vadd.f32 0.0, %v1234
    %v1236 = vpop.f32.mrb[0].mxu0
    %1237 = vdwg.mxu0
    %1238 = vrot.lane.b32.xlu0 %v1064, 112
    %v1239 = vpop.permute.xlu0 %1238
    %v1240 = vsel %vm265, %v1239, 0
    %1242 = vmatprep.subr.mxu0 0.0
    %1243 = vmatpush1.xpose.msra.mxu0 %v1071
    %1244 = vmatprep.subr.mxu0 0.0
    %1245 = vmatpush1.xpose.msra.mxu0 %v1073
    %1246 = vmatprep.subr.mxu0 0.0
    %1247 = vmatpush1.xpose.msra.mxu0 0.0
    %1248 = vmatprep.subr.mxu0 0.0
    %1249 = vmatpush1.xpose.msra.mxu0 0.0
    %1250 = vmatprep.subr.mxu0 0.0
    %1251 = vmatpush1.xpose.msra.mxu0 0.0
    %1252 = vmatprep.subr.mxu0 0.0
    %1253 = vmatpush1.xpose.msra.mxu0 0.0
    %1254 = vmatprep.subr.mxu0 0.0
    %1255 = vmatpush1.xpose.msra.mxu0 0.0
    %1256 = vmatprep.subr.mxu0 0.0
    %1257 = vmatpush1.xpose.msra.mxu0 0.0
    %1258 = vmatprep.subr.mxu0 0.0
    %1259 = vmatpush1.xpose.msra.mxu0 0.0
    %1260 = vmatprep.subr.mxu0 0.0
    %1261 = vmatpush1.xpose.msra.mxu0 0.0
    %1262 = vmatprep.subr.mxu0 0.0
    %1263 = vmatpush1.xpose.msra.mxu0 0.0
    %1264 = vmatprep.subr.mxu0 0.0
    %1265 = vmatpush1.xpose.msra.mxu0 0.0
    %1266 = vmatprep.subr.mxu0 0.0
    %1267 = vmatpush1.xpose.msra.mxu0 0.0
    %1268 = vmatprep.subr.mxu0 0.0
    %1269 = vmatpush1.xpose.msra.mxu0 0.0
    %1270 = vmatprep.subr.mxu0 0.0
    %1271 = vmatpush1.xpose.msra.mxu0 0.0
    %1272 = vmatprep.subr.mxu0 0.0
    %1273 = vmatpush1.xpose.msra.mxu0 0.0
    %1274 = vmatprep.subr.mxu0 0.0
    %1275 = vmatpush1.xpose.msra.mxu0 0.0
    %1276 = vmatprep.subr.mxu0 0.0
    %1277 = vmatpush1.xpose.msra.mxu0 0.0
    %1278 = vmatprep.subr.mxu0 0.0
    %1279 = vmatpush1.xpose.msra.mxu0 0.0
    %1280 = vmatprep.subr.mxu0 0.0
    %1281 = vmatpush1.xpose.msra.mxu0 0.0
    %1282 = vmatprep.subr.mxu0 0.0
    %1283 = vmatpush1.xpose.msra.mxu0 0.0
    %1284 = vmatprep.subr.mxu0 0.0
    %1285 = vmatpush1.xpose.msra.mxu0 0.0
    %1286 = vmatprep.subr.mxu0 0.0
    %1287 = vmatpush1.xpose.msra.mxu0 0.0
    %1288 = vmatprep.subr.mxu0 0.0
    %1289 = vmatpush1.xpose.msra.mxu0 0.0
    %1290 = vmatprep.subr.mxu0 0.0
    %1291 = vmatpush1.xpose.msra.mxu0 0.0
    %1292 = vmatprep.subr.mxu0 0.0
    %1293 = vmatpush1.xpose.msra.mxu0 0.0
    %1294 = vmatprep.subr.mxu0 0.0
    %1295 = vmatpush1.xpose.msra.mxu0 0.0
    %1296 = vmatprep.subr.mxu0 0.0
    %1297 = vmatpush1.xpose.msra.mxu0 0.0
    %1298 = vmatprep.subr.mxu0 0.0
    %1299 = vmatpush1.xpose.msra.mxu0 0.0
    %1300 = vmatprep.subr.mxu0 0.0
    %1301 = vmatpush1.xpose.msra.mxu0 0.0
    %1302 = vmatprep.subr.mxu0 0.0
    %1303 = vmatpush1.xpose.msra.mxu0 0.0
    %1304 = vmatprep.subr.mxu0 0.0
    %1305 = vmatpush1.xpose.msra.mxu0 0.0
    %1306 = vmatprep.mubr.f32.mxu0 0.0
    %1307 = vmatmul.mubr.f32.gmra.mrb[0].mxu0 %v1240
    %v1308 = vpop.f32.mrb[0].mxu0
    %v1309 = vadd.f32 0.0, %v1308
    %v1310 = vpop.f32.mrb[0].mxu0
    %1311 = vdwg.mxu0
    %v1312 = vmul.f32 %v1309, 0.25
    %v1313 = vmul.f32 %v1312, %v461
    %v1314 = vadd.f32 %v1313, %v463
    %v1315 = vsel %vm465, %v1314, -inf
    %1316 = vmax.xlane.f32.xlu0 %v1315
    %v1317 = vpop.xlane.xlu0 %1316
    %v1318 = vsub.f32 %v1314, %v1317
    %v1319 = vmul.f32 %v1318, 1.442695
    %v1320 = vpow.pop %v1319
    %v1321 = vsel %vm465, %v1320, 0.0
    %1322 = vadd.xlane.f32.xlu0 %v1321
    %v1323 = vpop.xlane.xlu0 %1322
    %v1324 = vrcp.pop %v1323
    %v1325 = vmul.f32 %v1320, %v1324
    %v1327 = vsel %vm265, %v1325, 0
    %1329 = vmatprep.subr.mxu0 0.0
    %1330 = vmatpush1.msra.mxu0 %v1160
    %1331 = vmatprep.subr.mxu0 0.0
    %1332 = vmatpush1.msra.mxu0 %v1162
    %1333 = vmatprep.subr.mxu0 0.0
    %1334 = vmatpush1.msra.mxu0 0.0
    %1335 = vmatprep.subr.mxu0 0.0
    %1336 = vmatpush1.msra.mxu0 0.0
    %1337 = vmatprep.subr.mxu0 0.0
    %1338 = vmatpush1.msra.mxu0 0.0
    %1339 = vmatprep.subr.mxu0 0.0
    %1340 = vmatpush1.msra.mxu0 0.0
    %1341 = vmatprep.subr.mxu0 0.0
    %1342 = vmatpush1.msra.mxu0 0.0
    %1343 = vmatprep.subr.mxu0 0.0
    %1344 = vmatpush1.msra.mxu0 0.0
    %1345 = vmatprep.subr.mxu0 0.0
    %1346 = vmatpush1.msra.mxu0 0.0
    %1347 = vmatprep.subr.mxu0 0.0
    %1348 = vmatpush1.msra.mxu0 0.0
    %1349 = vmatprep.subr.mxu0 0.0
    %1350 = vmatpush1.msra.mxu0 0.0
    %1351 = vmatprep.subr.mxu0 0.0
    %1352 = vmatpush1.msra.mxu0 0.0
    %1353 = vmatprep.subr.mxu0 0.0
    %1354 = vmatpush1.msra.mxu0 0.0
    %1355 = vmatprep.subr.mxu0 0.0
    %1356 = vmatpush1.msra.mxu0 0.0
    %1357 = vmatprep.subr.mxu0 0.0
    %1358 = vmatpush1.msra.mxu0 0.0
    %1359 = vmatprep.subr.mxu0 0.0
    %1360 = vmatpush1.msra.mxu0 0.0
    %1361 = vmatprep.subr.mxu0 0.0
    %1362 = vmatpush1.msra.mxu0 0.0
    %1363 = vmatprep.subr.mxu0 0.0
    %1364 = vmatpush1.msra.mxu0 0.0
    %1365 = vmatprep.subr.mxu0 0.0
    %1366 = vmatpush1.msra.mxu0 0.0
    %1367 = vmatprep.subr.mxu0 0.0
    %1368 = vmatpush1.msra.mxu0 0.0
    %1369 = vmatprep.subr.mxu0 0.0
    %1370 = vmatpush1.msra.mxu0 0.0
    %1371 = vmatprep.subr.mxu0 0.0
    %1372 = vmatpush1.msra.mxu0 0.0
    %1373 = vmatprep.subr.mxu0 0.0
    %1374 = vmatpush1.msra.mxu0 0.0
    %1375 = vmatprep.subr.mxu0 0.0
    %1376 = vmatpush1.msra.mxu0 0.0
    %1377 = vmatprep.subr.mxu0 0.0
    %1378 = vmatpush1.msra.mxu0 0.0
    %1379 = vmatprep.subr.mxu0 0.0
    %1380 = vmatpush1.msra.mxu0 0.0
    %1381 = vmatprep.subr.mxu0 0.0
    %1382 = vmatpush1.msra.mxu0 0.0
    %1383 = vmatprep.subr.mxu0 0.0
    %1384 = vmatpush1.msra.mxu0 0.0
    %1385 = vmatprep.subr.mxu0 0.0
    %1386 = vmatpush1.msra.mxu0 0.0
    %1387 = vmatprep.subr.mxu0 0.0
    %1388 = vmatpush1.msra.mxu0 0.0
    %1389 = vmatprep.subr.mxu0 0.0
    %1390 = vmatpush1.msra.mxu0 0.0
    %1391 = vmatprep.subr.mxu0 0.0
    %1392 = vmatpush1.msra.mxu0 0.0
    %1393 = vmatprep.mubr.f32.mxu0 0.0
    %1394 = vmatmul.mubr.f32.gmra.mrb[0].mxu0 %v1327
    %v1395 = vpop.f32.mrb[0].mxu0
    %v1396 = vadd.f32 0.0, %v1395
    %v1397 = vpop.f32.mrb[0].mxu0
    %1398 = vdwg.mxu0
    %1399 = vrot.lane.b32.xlu0 %v1064, 96
    %v1400 = vpop.permute.xlu0 %1399
    %1401 = vrot.lane.b32.xlu0 %v362, 80
    %v1402 = vpop.permute.xlu0 %1401
    %1403 = vrot.lane.b32.xlu0 %v363, 80
    %v1404 = vpop.permute.xlu0 %1403
    %v1405 = vsel %vm265, %v1400, 0
    %v1407 = vsel %vm265, %v1402, 0
    %v1409 = vsel %vm265, %v1404, 0
    %1411 = vmatprep.subr.mxu0 0.0
    %1412 = vmatpush1.xpose.msra.mxu0 %v1407
    %1413 = vmatprep.subr.mxu0 0.0
    %1414 = vmatpush1.xpose.msra.mxu0 %v1409
    %1415 = vmatprep.subr.mxu0 0.0
    %1416 = vmatpush1.xpose.msra.mxu0 0.0
    %1417 = vmatprep.subr.mxu0 0.0
    %1418 = vmatpush1.xpose.msra.mxu0 0.0
    %1419 = vmatprep.subr.mxu0 0.0
    %1420 = vmatpush1.xpose.msra.mxu0 0.0
    %1421 = vmatprep.subr.mxu0 0.0
    %1422 = vmatpush1.xpose.msra.mxu0 0.0
    %1423 = vmatprep.subr.mxu0 0.0
    %1424 = vmatpush1.xpose.msra.mxu0 0.0
    %1425 = vmatprep.subr.mxu0 0.0
    %1426 = vmatpush1.xpose.msra.mxu0 0.0
    %1427 = vmatprep.subr.mxu0 0.0
    %1428 = vmatpush1.xpose.msra.mxu0 0.0
    %1429 = vmatprep.subr.mxu0 0.0
    %1430 = vmatpush1.xpose.msra.mxu0 0.0
    %1431 = vmatprep.subr.mxu0 0.0
    %1432 = vmatpush1.xpose.msra.mxu0 0.0
    %1433 = vmatprep.subr.mxu0 0.0
    %1434 = vmatpush1.xpose.msra.mxu0 0.0
    %1435 = vmatprep.subr.mxu0 0.0
    %1436 = vmatpush1.xpose.msra.mxu0 0.0
    %1437 = vmatprep.subr.mxu0 0.0
    %1438 = vmatpush1.xpose.msra.mxu0 0.0
    %1439 = vmatprep.subr.mxu0 0.0
    %1440 = vmatpush1.xpose.msra.mxu0 0.0
    %1441 = vmatprep.subr.mxu0 0.0
    %1442 = vmatpush1.xpose.msra.mxu0 0.0
    %1443 = vmatprep.subr.mxu0 0.0
    %1444 = vmatpush1.xpose.msra.mxu0 0.0
    %1445 = vmatprep.subr.mxu0 0.0
    %1446 = vmatpush1.xpose.msra.mxu0 0.0
    %1447 = vmatprep.subr.mxu0 0.0
    %1448 = vmatpush1.xpose.msra.mxu0 0.0
    %1449 = vmatprep.subr.mxu0 0.0
    %1450 = vmatpush1.xpose.msra.mxu0 0.0
    %1451 = vmatprep.subr.mxu0 0.0
    %1452 = vmatpush1.xpose.msra.mxu0 0.0
    %1453 = vmatprep.subr.mxu0 0.0
    %1454 = vmatpush1.xpose.msra.mxu0 0.0
    %1455 = vmatprep.subr.mxu0 0.0
    %1456 = vmatpush1.xpose.msra.mxu0 0.0
    %1457 = vmatprep.subr.mxu0 0.0
    %1458 = vmatpush1.xpose.msra.mxu0 0.0
    %1459 = vmatprep.subr.mxu0 0.0
    %1460 = vmatpush1.xpose.msra.mxu0 0.0
    %1461 = vmatprep.subr.mxu0 0.0
    %1462 = vmatpush1.xpose.msra.mxu0 0.0
    %1463 = vmatprep.subr.mxu0 0.0
    %1464 = vmatpush1.xpose.msra.mxu0 0.0
    %1465 = vmatprep.subr.mxu0 0.0
    %1466 = vmatpush1.xpose.msra.mxu0 0.0
    %1467 = vmatprep.subr.mxu0 0.0
    %1468 = vmatpush1.xpose.msra.mxu0 0.0
    %1469 = vmatprep.subr.mxu0 0.0
    %1470 = vmatpush1.xpose.msra.mxu0 0.0
    %1471 = vmatprep.subr.mxu0 0.0
    %1472 = vmatpush1.xpose.msra.mxu0 0.0
    %1473 = vmatprep.subr.mxu0 0.0
    %1474 = vmatpush1.xpose.msra.mxu0 0.0
    %1475 = vmatprep.mubr.f32.mxu0 0.0
    %1476 = vmatmul.mubr.f32.gmra.mrb[0].mxu0 %v1405
    %v1477 = vpop.f32.mrb[0].mxu0
    %v1478 = vadd.f32 0.0, %v1477
    %v1479 = vpop.f32.mrb[0].mxu0
    %1480 = vdwg.mxu0
    %v1481 = vmul.f32 %v1478, 0.25
    %v1482 = vmul.f32 %v1481, %v461
    %v1483 = vadd.f32 %v1482, %v463
    %v1484 = vsel %vm465, %v1483, -inf
    %1485 = vmax.xlane.f32.xlu0 %v1484
    %v1486 = vpop.xlane.xlu0 %1485
    %v1487 = vsub.f32 %v1483, %v1486
    %v1488 = vmul.f32 %v1487, 1.442695
    %v1489 = vpow.pop %v1488
    %v1490 = vsel %vm465, %v1489, 0.0
    %1491 = vadd.xlane.f32.xlu0 %v1490
    %v1492 = vpop.xlane.xlu0 %1491
    %v1493 = vrcp.pop %v1492
    %v1494 = vmul.f32 %v1489, %v1493
    %1495 = vrot.lane.b32.xlu0 %v374, 80
    %v1496 = vpop.permute.xlu0 %1495
    %1497 = vrot.lane.b32.xlu0 %v375, 80
    %v1498 = vpop.permute.xlu0 %1497
    %v1502 = vsel %vm265, %v1494, 0
    %1504 = vmatprep.subr.mxu0 0.0
    %1505 = vmatpush1.msra.mxu0 %v1496
    %1506 = vmatprep.subr.mxu0 0.0
    %1507 = vmatpush1.msra.mxu0 %v1498
    %1508 = vmatprep.subr.mxu0 0.0
    %1509 = vmatpush1.msra.mxu0 0.0
    %1510 = vmatprep.subr.mxu0 0.0
    %1511 = vmatpush1.msra.mxu0 0.0
    %1512 = vmatprep.subr.mxu0 0.0
    %1513 = vmatpush1.msra.mxu0 0.0
    %1514 = vmatprep.subr.mxu0 0.0
    %1515 = vmatpush1.msra.mxu0 0.0
    %1516 = vmatprep.subr.mxu0 0.0
    %1517 = vmatpush1.msra.mxu0 0.0
    %1518 = vmatprep.subr.mxu0 0.0
    %1519 = vmatpush1.msra.mxu0 0.0
    %1520 = vmatprep.subr.mxu0 0.0
    %1521 = vmatpush1.msra.mxu0 0.0
    %1522 = vmatprep.subr.mxu0 0.0
    %1523 = vmatpush1.msra.mxu0 0.0
    %1524 = vmatprep.subr.mxu0 0.0
    %1525 = vmatpush1.msra.mxu0 0.0
    %1526 = vmatprep.subr.mxu0 0.0
    %1527 = vmatpush1.msra.mxu0 0.0
    %1528 = vmatprep.subr.mxu0 0.0
    %1529 = vmatpush1.msra.mxu0 0.0
    %1530 = vmatprep.subr.mxu0 0.0
    %1531 = vmatpush1.msra.mxu0 0.0
    %1532 = vmatprep.subr.mxu0 0.0
    %1533 = vmatpush1.msra.mxu0 0.0
    %1534 = vmatprep.subr.mxu0 0.0
    %1535 = vmatpush1.msra.mxu0 0.0
    %1536 = vmatprep.subr.mxu0 0.0
    %1537 = vmatpush1.msra.mxu0 0.0
    %1538 = vmatprep.subr.mxu0 0.0
    %1539 = vmatpush1.msra.mxu0 0.0
    %1540 = vmatprep.subr.mxu0 0.0
    %1541 = vmatpush1.msra.mxu0 0.0
    %1542 = vmatprep.subr.mxu0 0.0
    %1543 = vmatpush1.msra.mxu0 0.0
    %1544 = vmatprep.subr.mxu0 0.0
    %1545 = vmatpush1.msra.mxu0 0.0
    %1546 = vmatprep.subr.mxu0 0.0
    %1547 = vmatpush1.msra.mxu0 0.0
    %1548 = vmatprep.subr.mxu0 0.0
    %1549 = vmatpush1.msra.mxu0 0.0
    %1550 = vmatprep.subr.mxu0 0.0
    %1551 = vmatpush1.msra.mxu0 0.0
    %1552 = vmatprep.subr.mxu0 0.0
    %1553 = vmatpush1.msra.mxu0 0.0
    %1554 = vmatprep.subr.mxu0 0.0
    %1555 = vmatpush1.msra.mxu0 0.0
    %1556 = vmatprep.subr.mxu0 0.0
    %1557 = vmatpush1.msra.mxu0 0.0
    %1558 = vmatprep.subr.mxu0 0.0
    %1559 = vmatpush1.msra.mxu0 0.0
    %1560 = vmatprep.subr.mxu0 0.0
    %1561 = vmatpush1.msra.mxu0 0.0
    %1562 = vmatprep.subr.mxu0 0.0
    %1563 = vmatpush1.msra.mxu0 0.0
    %1564 = vmatprep.subr.mxu0 0.0
    %1565 = vmatpush1.msra.mxu0 0.0
    %1566 = vmatprep.subr.mxu0 0.0
    %1567 = vmatpush1.msra.mxu0 0.0
    %1568 = vmatprep.mubr.f32.mxu0 0.0
    %1569 = vmatmul.mubr.f32.gmra.mrb[0].mxu0 %v1502
    %v1570 = vpop.f32.mrb[0].mxu0
    %v1571 = vadd.f32 0.0, %v1570
    %v1572 = vpop.f32.mrb[0].mxu0
    %1573 = vdwg.mxu0
    %1574 = vrot.lane.b32.xlu0 %v1064, 80
    %v1575 = vpop.permute.xlu0 %1574
    %v1576 = vsel %vm265, %v1575, 0
    %1578 = vmatprep.subr.mxu0 0.0
    %1579 = vmatpush1.xpose.msra.mxu0 %v1407
    %1580 = vmatprep.subr.mxu0 0.0
    %1581 = vmatpush1.xpose.msra.mxu0 %v1409
    %1582 = vmatprep.subr.mxu0 0.0
    %1583 = vmatpush1.xpose.msra.mxu0 0.0
    %1584 = vmatprep.subr.mxu0 0.0
    %1585 = vmatpush1.xpose.msra.mxu0 0.0
    %1586 = vmatprep.subr.mxu0 0.0
    %1587 = vmatpush1.xpose.msra.mxu0 0.0
    %1588 = vmatprep.subr.mxu0 0.0
    %1589 = vmatpush1.xpose.msra.mxu0 0.0
    %1590 = vmatprep.subr.mxu0 0.0
    %1591 = vmatpush1.xpose.msra.mxu0 0.0
    %1592 = vmatprep.subr.mxu0 0.0
    %1593 = vmatpush1.xpose.msra.mxu0 0.0
    %1594 = vmatprep.subr.mxu0 0.0
    %1595 = vmatpush1.xpose.msra.mxu0 0.0
    %1596 = vmatprep.subr.mxu0 0.0
    %1597 = vmatpush1.xpose.msra.mxu0 0.0
    %1598 = vmatprep.subr.mxu0 0.0
    %1599 = vmatpush1.xpose.msra.mxu0 0.0
    %1600 = vmatprep.subr.mxu0 0.0
    %1601 = vmatpush1.xpose.msra.mxu0 0.0
    %1602 = vmatprep.subr.mxu0 0.0
    %1603 = vmatpush1.xpose.msra.mxu0 0.0
    %1604 = vmatprep.subr.mxu0 0.0
    %1605 = vmatpush1.xpose.msra.mxu0 0.0
    %1606 = vmatprep.subr.mxu0 0.0
    %1607 = vmatpush1.xpose.msra.mxu0 0.0
    %1608 = vmatprep.subr.mxu0 0.0
    %1609 = vmatpush1.xpose.msra.mxu0 0.0
    %1610 = vmatprep.subr.mxu0 0.0
    %1611 = vmatpush1.xpose.msra.mxu0 0.0
    %1612 = vmatprep.subr.mxu0 0.0
    %1613 = vmatpush1.xpose.msra.mxu0 0.0
    %1614 = vmatprep.subr.mxu0 0.0
    %1615 = vmatpush1.xpose.msra.mxu0 0.0
    %1616 = vmatprep.subr.mxu0 0.0
    %1617 = vmatpush1.xpose.msra.mxu0 0.0
    %1618 = vmatprep.subr.mxu0 0.0
    %1619 = vmatpush1.xpose.msra.mxu0 0.0
    %1620 = vmatprep.subr.mxu0 0.0
    %1621 = vmatpush1.xpose.msra.mxu0 0.0
    %1622 = vmatprep.subr.mxu0 0.0
    %1623 = vmatpush1.xpose.msra.mxu0 0.0
    %1624 = vmatprep.subr.mxu0 0.0
    %1625 = vmatpush1.xpose.msra.mxu0 0.0
    %1626 = vmatprep.subr.mxu0 0.0
    %1627 = vmatpush1.xpose.msra.mxu0 0.0
    %1628 = vmatprep.subr.mxu0 0.0
    %1629 = vmatpush1.xpose.msra.mxu0 0.0
    %1630 = vmatprep.subr.mxu0 0.0
    %1631 = vmatpush1.xpose.msra.mxu0 0.0
    %1632 = vmatprep.subr.mxu0 0.0
    %1633 = vmatpush1.xpose.msra.mxu0 0.0
    %1634 = vmatprep.subr.mxu0 0.0
    %1635 = vmatpush1.xpose.msra.mxu0 0.0
    %1636 = vmatprep.subr.mxu0 0.0
    %1637 = vmatpush1.xpose.msra.mxu0 0.0
    %1638 = vmatprep.subr.mxu0 0.0
    %1639 = vmatpush1.xpose.msra.mxu0 0.0
    %1640 = vmatprep.subr.mxu0 0.0
    %1641 = vmatpush1.xpose.msra.mxu0 0.0
    %1642 = vmatprep.mubr.f32.mxu0 0.0
    %1643 = vmatmul.mubr.f32.gmra.mrb[0].mxu0 %v1576
    %v1644 = vpop.f32.mrb[0].mxu0
    %v1645 = vadd.f32 0.0, %v1644
    %v1646 = vpop.f32.mrb[0].mxu0
    %1647 = vdwg.mxu0
    %v1648 = vmul.f32 %v1645, 0.25
    %v1649 = vmul.f32 %v1648, %v461
    %v1650 = vadd.f32 %v1649, %v463
    %v1651 = vsel %vm465, %v1650, -inf
    %1652 = vmax.xlane.f32.xlu0 %v1651
    %v1653 = vpop.xlane.xlu0 %1652
    %v1654 = vsub.f32 %v1650, %v1653
    %v1655 = vmul.f32 %v1654, 1.442695
    %v1656 = vpow.pop %v1655
    %v1657 = vsel %vm465, %v1656, 0.0
    %1658 = vadd.xlane.f32.xlu0 %v1657
    %v1659 = vpop.xlane.xlu0 %1658
    %v1660 = vrcp.pop %v1659
    %v1661 = vmul.f32 %v1656, %v1660
    %v1663 = vsel %vm265, %v1661, 0
    %1665 = vmatprep.subr.mxu0 0.0
    %1666 = vmatpush1.msra.mxu0 %v1496
    %1667 = vmatprep.subr.mxu0 0.0
    %1668 = vmatpush1.msra.mxu0 %v1498
    %1669 = vmatprep.subr.mxu0 0.0
    %1670 = vmatpush1.msra.mxu0 0.0
    %1671 = vmatprep.subr.mxu0 0.0
    %1672 = vmatpush1.msra.mxu0 0.0
    %1673 = vmatprep.subr.mxu0 0.0
    %1674 = vmatpush1.msra.mxu0 0.0
    %1675 = vmatprep.subr.mxu0 0.0
    %1676 = vmatpush1.msra.mxu0 0.0
    %1677 = vmatprep.subr.mxu0 0.0
    %1678 = vmatpush1.msra.mxu0 0.0
    %1679 = vmatprep.subr.mxu0 0.0
    %1680 = vmatpush1.msra.mxu0 0.0
    %1681 = vmatprep.subr.mxu0 0.0
    %1682 = vmatpush1.msra.mxu0 0.0
    %1683 = vmatprep.subr.mxu0 0.0
    %1684 = vmatpush1.msra.mxu0 0.0
    %1685 = vmatprep.subr.mxu0 0.0
    %1686 = vmatpush1.msra.mxu0 0.0
    %1687 = vmatprep.subr.mxu0 0.0
    %1688 = vmatpush1.msra.mxu0 0.0
    %1689 = vmatprep.subr.mxu0 0.0
    %1690 = vmatpush1.msra.mxu0 0.0
    %1691 = vmatprep.subr.mxu0 0.0
    %1692 = vmatpush1.msra.mxu0 0.0
    %1693 = vmatprep.subr.mxu0 0.0
    %1694 = vmatpush1.msra.mxu0 0.0
    %1695 = vmatprep.subr.mxu0 0.0
    %1696 = vmatpush1.msra.mxu0 0.0
    %1697 = vmatprep.subr.mxu0 0.0
    %1698 = vmatpush1.msra.mxu0 0.0
    %1699 = vmatprep.subr.mxu0 0.0
    %1700 = vmatpush1.msra.mxu0 0.0
    %1701 = vmatprep.subr.mxu0 0.0
    %1702 = vmatpush1.msra.mxu0 0.0
    %1703 = vmatprep.subr.mxu0 0.0
    %1704 = vmatpush1.msra.mxu0 0.0
    %1705 = vmatprep.subr.mxu0 0.0
    %1706 = vmatpush1.msra.mxu0 0.0
    %1707 = vmatprep.subr.mxu0 0.0
    %1708 = vmatpush1.msra.mxu0 0.0
    %1709 = vmatprep.subr.mxu0 0.0
    %1710 = vmatpush1.msra.mxu0 0.0
    %1711 = vmatprep.subr.mxu0 0.0
    %1712 = vmatpush1.msra.mxu0 0.0
    %1713 = vmatprep.subr.mxu0 0.0
    %1714 = vmatpush1.msra.mxu0 0.0
    %1715 = vmatprep.subr.mxu0 0.0
    %1716 = vmatpush1.msra.mxu0 0.0
    %1717 = vmatprep.subr.mxu0 0.0
    %1718 = vmatpush1.msra.mxu0 0.0
    %1719 = vmatprep.subr.mxu0 0.0
    %1720 = vmatpush1.msra.mxu0 0.0
    %1721 = vmatprep.subr.mxu0 0.0
    %1722 = vmatpush1.msra.mxu0 0.0
    %1723 = vmatprep.subr.mxu0 0.0
    %1724 = vmatpush1.msra.mxu0 0.0
    %1725 = vmatprep.subr.mxu0 0.0
    %1726 = vmatpush1.msra.mxu0 0.0
    %1727 = vmatprep.subr.mxu0 0.0
    %1728 = vmatpush1.msra.mxu0 0.0
    %1729 = vmatprep.mubr.f32.mxu0 0.0
    %1730 = vmatmul.mubr.f32.gmra.mrb[0].mxu0 %v1663
    %v1731 = vpop.f32.mrb[0].mxu0
    %v1732 = vadd.f32 0.0, %v1731
    %v1733 = vpop.f32.mrb[0].mxu0
    %1734 = vdwg.mxu0
    %1736 = vrot.lane.b32.xlu0 %v1396, 16
    %v1737 = vpop.permute.xlu0 %1736
    %1740 = vrot.lane.b32.xlu0 %v1571, 32
    %v1741 = vpop.permute.xlu0 %1740
    %1744 = vrot.lane.b32.xlu0 %v1732, 48
    %v1745 = vpop.permute.xlu0 %1744
    %v1747 = vsel %vm265, %v1235, %v1737
    %v1748 = vsel %vm267, %v1747, %v1741
    %v1749 = vsel %vm269, %v1748, %v1745
    %v1751 = vrot.slane %v1749, 7
    %vm1753 = vcmask 1040384
    %v1754 = vsel %vm1753, %v1063, %v1751
    %v1755 = vld [vmem:[#allocation2] sm:$0xff]
    %v1756 = vld [vmem:[#allocation2 + $0x8] sm:$0xff]
    %v1757 = vld [vmem:[#allocation2 + $0x10] sm:$0xff]
    %v1758 = vld [vmem:[#allocation2 + $0x18] sm:$0xff]
    %v1759 = vld [vmem:[#allocation2 + $0x20] sm:$0xff]
    %v1760 = vld [vmem:[#allocation2 + $0x28] sm:$0xff]
    %v1761 = vld [vmem:[#allocation2 + $0x30] sm:$0xff]
    %v1762 = vld [vmem:[#allocation2 + $0x38] sm:$0xff]
    %v1764 = vsel %vm123, %v1754, 0
    %1766 = vmatprep.subr.mxu0 0.0
    %1767 = vmatpush1.msra.mxu0 %v1755
    %1768 = vmatprep.subr.mxu0 0.0
    %1769 = vmatpush1.msra.mxu0 %v1756
    %1770 = vmatprep.subr.mxu0 0.0
    %1771 = vmatpush1.msra.mxu0 %v1757
    %1772 = vmatprep.subr.mxu0 0.0
    %1773 = vmatpush1.msra.mxu0 %v1758
    %1774 = vmatprep.subr.mxu0 0.0
    %1775 = vmatpush1.msra.mxu0 %v1759
    %1776 = vmatprep.subr.mxu0 0.0
    %1777 = vmatpush1.msra.mxu0 %v1760
    %1778 = vmatprep.subr.mxu0 0.0
    %1779 = vmatpush1.msra.mxu0 %v1761
    %1780 = vmatprep.subr.mxu0 0.0
    %1781 = vmatpush1.msra.mxu0 %v1762
    %1782 = vmatprep.subr.mxu0 0.0
    %1783 = vmatpush1.msra.mxu0 0.0
    %1784 = vmatprep.subr.mxu0 0.0
    %1785 = vmatpush1.msra.mxu0 0.0
    %1786 = vmatprep.subr.mxu0 0.0
    %1787 = vmatpush1.msra.mxu0 0.0
    %1788 = vmatprep.subr.mxu0 0.0
    %1789 = vmatpush1.msra.mxu0 0.0
    %1790 = vmatprep.subr.mxu0 0.0
    %1791 = vmatpush1.msra.mxu0 0.0
    %1792 = vmatprep.subr.mxu0 0.0
    %1793 = vmatpush1.msra.mxu0 0.0
    %1794 = vmatprep.subr.mxu0 0.0
    %1795 = vmatpush1.msra.mxu0 0.0
    %1796 = vmatprep.subr.mxu0 0.0
    %1797 = vmatpush1.msra.mxu0 0.0
    %1798 = vmatprep.subr.mxu0 0.0
    %1799 = vmatpush1.msra.mxu0 0.0
    %1800 = vmatprep.subr.mxu0 0.0
    %1801 = vmatpush1.msra.mxu0 0.0
    %1802 = vmatprep.subr.mxu0 0.0
    %1803 = vmatpush1.msra.mxu0 0.0
    %1804 = vmatprep.subr.mxu0 0.0
    %1805 = vmatpush1.msra.mxu0 0.0
    %1806 = vmatprep.subr.mxu0 0.0
    %1807 = vmatpush1.msra.mxu0 0.0
    %1808 = vmatprep.subr.mxu0 0.0
    %1809 = vmatpush1.msra.mxu0 0.0
    %1810 = vmatprep.subr.mxu0 0.0
    %1811 = vmatpush1.msra.mxu0 0.0
    %1812 = vmatprep.subr.mxu0 0.0
    %1813 = vmatpush1.msra.mxu0 0.0
    %1814 = vmatprep.subr.mxu0 0.0
    %1815 = vmatpush1.msra.mxu0 0.0
    %1816 = vmatprep.subr.mxu0 0.0
    %1817 = vmatpush1.msra.mxu0 0.0
    %1818 = vmatprep.subr.mxu0 0.0
    %1819 = vmatpush1.msra.mxu0 0.0
    %1820 = vmatprep.subr.mxu0 0.0
    %1821 = vmatpush1.msra.mxu0 0.0
    %1822 = vmatprep.subr.mxu0 0.0
    %1823 = vmatpush1.msra.mxu0 0.0
    %1824 = vmatprep.subr.mxu0 0.0
    %1825 = vmatpush1.msra.mxu0 0.0
    %1826 = vmatprep.subr.mxu0 0.0
    %1827 = vmatpush1.msra.mxu0 0.0
    %1828 = vmatprep.subr.mxu0 0.0
    %1829 = vmatpush1.msra.mxu0 0.0
    %1830 = vmatprep.mubr.f32.mxu0 0.0
    %1831 = vmatmul.mubr.f32.gmra.mrb[0].mxu0 %v1764
    %v1832 = vpop.f32.mrb[0].mxu0
    %v1833 = vadd.f32 %v90, %v1832
    %v1834 = vpop.f32.mrb[0].mxu0
    %1835 = vdwg.mxu0
    %v1836 = vld [vmem:[%s2] sm:$0x1]
    %v1837 = vand.u32 2147483647, %v1833
    %v1838 = vsel %vm93, %v1837, -inf
    %1839 = vmax.xlane.f32.xlu0 %v1838
    %v1840 = vpop.xlane.xlu0 %1839
    %v1841 = vrcp.pop %v1840
    %v1842 = vmul.f32 %v1833, %v1841
    %v1843 = vmul.f32 %v1842, %v1842
    %v1844 = vsel %vm93, %v1843, 0.0
    %1845 = vadd.xlane.f32.xlu0 %v1844
    %v1846 = vpop.xlane.xlu0 %1845
    %v1847 = vmul.f32 %v1846, %v103
    %v1848 = vadd.f32 %v1847, 1e-06
    %v1849 = vrsqrt.pop %v1848
    %v1850 = vmul.f32 %v1842, %v1849
    %v1852 = vlaneseq
    %v1853 = vshrl.u32 %v1852, 7
    %v1854 = vsub.s32 0, %v1853
    %v1855 = vrot.slane %v1836, %v1854
    %v1857 = vmul.f32 %v1855, %v1850
    %v1858 = vld [vmem:[%s5] sm:$0xff]
    %v1859 = vld [vmem:[%s5 + $0x8] sm:$0xff]
    %v1860 = vld [vmem:[%s5 + $0x10] sm:$0xff]
    %v1861 = vld [vmem:[%s5 + $0x18] sm:$0xff]
    %v1862 = vld [vmem:[%s5 + $0x20] sm:$0xff]
    %v1863 = vld [vmem:[%s5 + $0x28] sm:$0xff]
    %v1864 = vld [vmem:[%s5 + $0x30] sm:$0xff]
    %v1865 = vld [vmem:[%s5 + $0x38] sm:$0xff]
    %v1866 = vld [vmem:[%s5 + $0x40] sm:$0xff]
    %v1867 = vld [vmem:[%s5 + $0x48] sm:$0xff]
    %v1868 = vld [vmem:[%s5 + $0x50] sm:$0xff]
    %v1869 = vld [vmem:[%s5 + $0x58] sm:$0xff]
    %v1870 = vld [vmem:[%s5 + $0x60] sm:$0xff]
    %v1871 = vld [vmem:[%s5 + $0x68] sm:$0xff]
    %v1872 = vld [vmem:[%s5 + $0x70] sm:$0xff]
    %v1873 = vld [vmem:[%s5 + $0x78] sm:$0xff]
    %v1875 = vsel %vm123, %v1857, 0
    %1877 = vmatprep.subr.mxu0 %v1859
    %1878 = vmatpush1.msra.mxu0 %v1858
    %1879 = vmatprep.subr.mxu0 %v1861
    %1880 = vmatpush1.msra.mxu0 %v1860
    %1881 = vmatprep.subr.mxu0 %v1863
    %1882 = vmatpush1.msra.mxu0 %v1862
    %1883 = vmatprep.subr.mxu0 %v1865
    %1884 = vmatpush1.msra.mxu0 %v1864
    %1885 = vmatprep.subr.mxu0 %v1867
    %1886 = vmatpush1.msra.mxu0 %v1866
    %1887 = vmatprep.subr.mxu0 %v1869
    %1888 = vmatpush1.msra.mxu0 %v1868
    %1889 = vmatprep.subr.mxu0 %v1871
    %1890 = vmatpush1.msra.mxu0 %v1870
    %1891 = vmatprep.subr.mxu0 %v1873
    %1892 = vmatpush1.msra.mxu0 %v1872
    %1893 = vmatprep.subr.mxu0 0.0
    %1894 = vmatpush1.msra.mxu0 0.0
    %1895 = vmatprep.subr.mxu0 0.0
    %1896 = vmatpush1.msra.mxu0 0.0
    %1897 = vmatprep.subr.mxu0 0.0
    %1898 = vmatpush1.msra.mxu0 0.0
    %1899 = vmatprep.subr.mxu0 0.0
    %1900 = vmatpush1.msra.mxu0 0.0
    %1901 = vmatprep.subr.mxu0 0.0
    %1902 = vmatpush1.msra.mxu0 0.0
    %1903 = vmatprep.subr.mxu0 0.0
    %1904 = vmatpush1.msra.mxu0 0.0
    %1905 = vmatprep.subr.mxu0 0.0
    %1906 = vmatpush1.msra.mxu0 0.0
    %1907 = vmatprep.subr.mxu0 0.0
    %1908 = vmatpush1.msra.mxu0 0.0
    %1909 = vmatprep.subr.mxu0 0.0
    %1910 = vmatpush1.msra.mxu0 0.0
    %1911 = vmatprep.subr.mxu0 0.0
    %1912 = vmatpush1.msra.mxu0 0.0
    %1913 = vmatprep.subr.mxu0 0.0
    %1914 = vmatpush1.msra.mxu0 0.0
    %1915 = vmatprep.subr.mxu0 0.0
    %1916 = vmatpush1.msra.mxu0 0.0
    %1917 = vmatprep.subr.mxu0 0.0
    %1918 = vmatpush1.msra.mxu0 0.0
    %1919 = vmatprep.subr.mxu0 0.0
    %1920 = vmatpush1.msra.mxu0 0.0
    %1921 = vmatprep.subr.mxu0 0.0
    %1922 = vmatpush1.msra.mxu0 0.0
    %1923 = vmatprep.subr.mxu0 0.0
    %1924 = vmatpush1.msra.mxu0 0.0
    %1925 = vmatprep.subr.mxu0 0.0
    %1926 = vmatpush1.msra.mxu0 0.0
    %1927 = vmatprep.subr.mxu0 0.0
    %1928 = vmatpush1.msra.mxu0 0.0
    %1929 = vmatprep.subr.mxu0 0.0
    %1930 = vmatpush1.msra.mxu0 0.0
    %1931 = vmatprep.subr.mxu0 0.0
    %1932 = vmatpush1.msra.mxu0 0.0
    %1933 = vmatprep.subr.mxu0 0.0
    %1934 = vmatpush1.msra.mxu0 0.0
    %1935 = vmatprep.subr.mxu0 0.0
    %1936 = vmatpush1.msra.mxu0 0.0
    %1937 = vmatprep.subr.mxu0 0.0
    %1938 = vmatpush1.msra.mxu0 0.0
    %1939 = vmatprep.subr.mxu0 0.0
    %1940 = vmatpush1.msra.mxu0 0.0
    %1941 = vmatprep.mubr.f32.mxu0 0.0
    %1942 = vmatmul.mubr.f32.gmra.mrb[0].mxu0 %v1875
    %v1943 = vpop.f32.mrb[0].mxu0
    %v1944 = vadd.f32 0.0, %v1943
    %v1945 = vpop.f32.mrb[0].mxu0
    %v1946 = vadd.f32 0.0, %v1945
    %1947 = vdwg.mxu0
    %v1948 = vxor.u32 %v1944, 2147483648
    %v1949 = vmul.f32 %v1948, 1.442695
    %v1950 = vpow.pop %v1949
    %v1951 = vadd.f32 %v1950, 1.0
    %v1952 = vrcp.pop %v1951
    %v1953 = vmul.f32 1.0, %v1952
    %v1954 = vmul.f32 %v1944, %v1953
    %v1955 = vmul.f32 %v1954, %v1946
    %v1956 = vld [vmem:[%s6] sm:$0xff]
    %v1957 = vld [vmem:[%s6 + $0x8] sm:$0xff]
    %v1958 = vld [vmem:[%s6 + $0x10] sm:$0xff]
    %v1959 = vld [vmem:[%s6 + $0x18] sm:$0xff]
    %v1960 = vld [vmem:[%s6 + $0x20] sm:$0xff]
    %v1961 = vld [vmem:[%s6 + $0x28] sm:$0xff]
    %v1962 = vld [vmem:[%s6 + $0x30] sm:$0xff]
    %v1963 = vld [vmem:[%s6 + $0x38] sm:$0xff]
    %v1964 = vld [vmem:[%s6 + $0x40] sm:$0xff]
    %v1965 = vld [vmem:[%s6 + $0x48] sm:$0xff]
    %v1966 = vld [vmem:[%s6 + $0x50] sm:$0xff]
    %v1967 = vld [vmem:[%s6 + $0x58] sm:$0xff]
    %v1968 = vld [vmem:[%s6 + $0x60] sm:$0xff]
    %v1969 = vld [vmem:[%s6 + $0x68] sm:$0xff]
    %v1970 = vld [vmem:[%s6 + $0x70] sm:$0xff]
    %v1971 = vld [vmem:[%s6 + $0x78] sm:$0xff]
    %1972 = vmatprep.subr.mxu0 0.0
    %1973 = vmatpush1.msra.mxu0 %v1956
    %1974 = vmatprep.subr.mxu0 0.0
    %1975 = vmatpush1.msra.mxu0 %v1957
    %1976 = vmatprep.subr.mxu0 0.0
    %1977 = vmatpush1.msra.mxu0 %v1958
    %1978 = vmatprep.subr.mxu0 0.0
    %1979 = vmatpush1.msra.mxu0 %v1959
    %1980 = vmatprep.subr.mxu0 0.0
    %1981 = vmatpush1.msra.mxu0 %v1960
    %1982 = vmatprep.subr.mxu0 0.0
    %1983 = vmatpush1.msra.mxu0 %v1961
    %1984 = vmatprep.subr.mxu0 0.0
    %1985 = vmatpush1.msra.mxu0 %v1962
    %1986 = vmatprep.subr.mxu0 0.0
    %1987 = vmatpush1.msra.mxu0 %v1963
    %1988 = vmatprep.subr.mxu0 0.0
    %1989 = vmatpush1.msra.mxu0 %v1964
    %1990 = vmatprep.subr.mxu0 0.0
    %1991 = vmatpush1.msra.mxu0 %v1965
    %1992 = vmatprep.subr.mxu0 0.0
    %1993 = vmatpush1.msra.mxu0 %v1966
    %1994 = vmatprep.subr.mxu0 0.0
    %1995 = vmatpush1.msra.mxu0 %v1967
    %1996 = vmatprep.subr.mxu0 0.0
    %1997 = vmatpush1.msra.mxu0 %v1968
    %1998 = vmatprep.subr.mxu0 0.0
    %1999 = vmatpush1.msra.mxu0 %v1969
    %2000 = vmatprep.subr.mxu0 0.0
    %2001 = vmatpush1.msra.mxu0 %v1970
    %2002 = vmatprep.subr.mxu0 0.0
    %2003 = vmatpush1.msra.mxu0 %v1971
    %2004 = vmatprep.subr.mxu0 0.0
    %2005 = vmatpush1.msra.mxu0 0.0
    %2006 = vmatprep.subr.mxu0 0.0
    %2007 = vmatpush1.msra.mxu0 0.0
    %2008 = vmatprep.subr.mxu0 0.0
    %2009 = vmatpush1.msra.mxu0 0.0
    %2010 = vmatprep.subr.mxu0 0.0
    %2011 = vmatpush1.msra.mxu0 0.0
    %2012 = vmatprep.subr.mxu0 0.0
    %2013 = vmatpush1.msra.mxu0 0.0
    %2014 = vmatprep.subr.mxu0 0.0
    %2015 = vmatpush1.msra.mxu0 0.0
    %2016 = vmatprep.subr.mxu0 0.0
    %2017 = vmatpush1.msra.mxu0 0.0
    %2018 = vmatprep.subr.mxu0 0.0
    %2019 = vmatpush1.msra.mxu0 0.0
    %2020 = vmatprep.subr.mxu0 0.0
    %2021 = vmatpush1.msra.mxu0 0.0
    %2022 = vmatprep.subr.mxu0 0.0
    %2023 = vmatpush1.msra.mxu0 0.0
    %2024 = vmatprep.subr.mxu0 0.0
    %2025 = vmatpush1.msra.mxu0 0.0
    %2026 = vmatprep.subr.mxu0 0.0
    %2027 = vmatpush1.msra.mxu0 0.0
    %2028 = vmatprep.subr.mxu0 0.0
    %2029 = vmatpush1.msra.mxu0 0.0
    %2030 = vmatprep.subr.mxu0 0.0
    %2031 = vmatpush1.msra.mxu0 0.0
    %2032 = vmatprep.subr.mxu0 0.0
    %2033 = vmatpush1.msra.mxu0 0.0
    %2034 = vmatprep.subr.mxu0 0.0
    %2035 = vmatpush1.msra.mxu0 0.0
    %2036 = vmatprep.mubr.f32.mxu0 0.0
    %2037 = vmatmul.mubr.f32.gmra.mrb[0].mxu0 %v1955
    %v2038 = vpop.f32.mrb[0].mxu0
    %v2039 = vadd.f32 %v1833, %v2038
    %v2040 = vpop.f32.mrb[0].mxu0
    %2041 = vdwg.mxu0
    %2042 = vst.msk [vmem:[#allocation8] sm:$0x3] %vm93, %v2039
    // Predicated region
    $region66: #{tpu_custom_call.1} parent=1 // pred_check
      _
    $region67: #{tpu_custom_call.1} parent=1 // pred_check_branch
      %2044 = sbr.rel (0) target = $region69
    $region68: #{tpu_custom_call.1} parent=1 // pred_region
      %s2046 = ssub.s32 32, 32
      %2047 = vsyncadd [#allocation4], %s2046
      %s2049 = sshll.u32 [#allocation8], 4
      %s2050 = int_to_ptr.vmem [resolvable:$true] %s2049
      %2052 = dma.vmem_to_hbm [thread:$0]  %s2050, 32, %s13, [#allocation4]
    $region69: #{tpu_custom_call.1} parent=1 // pred_fallthru
      _
    // Predicated region
    $region70: #{tpu_custom_call.1} parent=1 // pred_check
      _
    $region71: #{tpu_custom_call.1} parent=1 // pred_check_branch
      %2054 = sbr.rel (0) target = $region73
    $region72: #{tpu_custom_call.1} parent=1 // pred_region
      %s2056 = ssub.s32 256, 256
      %2057 = vsyncadd [#allocation10], %s2056
      %s2058 = sshll.u32 [#allocation9], 4
      %s2059 = int_to_ptr.vmem [resolvable:$true] %s2058
      %2064 = dma.vmem_to_hbm [thread:$0]  %s2059, 256, %s14, [#allocation10], 128, 128, 8
    $region73: #{tpu_custom_call.1} parent=1 // pred_fallthru
      _
    // Predicated region
    $region74: #{tpu_custom_call.1} parent=1 // pred_check
      _
    $region75: #{tpu_custom_call.1} parent=1 // pred_check_branch
      %2066 = sbr.rel (0) target = $region77
    $region76: #{tpu_custom_call.1} parent=1 // pred_region
      %s2068 = ssub.s32 256, 256
      %2069 = vsyncadd [#allocation10], %s2068
      %s2070 = sshll.u32 [#allocation11], 4
      %s2071 = int_to_ptr.vmem [resolvable:$true] %s2070
      %2076 = dma.vmem_to_hbm [thread:$0]  %s2071, 256, %s15, [#allocation10], 128, 128, 8
    $region77: #{tpu_custom_call.1} parent=1 // pred_fallthru
      _
    // Predicated region
    $region78: #{tpu_custom_call.1} parent=1 // pred_check
      _
    $region79: #{tpu_custom_call.1} parent=1 // pred_check_branch
      %2078 = sbr.rel (0) target = $region81
    $region80: #{tpu_custom_call.1} parent=1 // pred_region
      %2079 = dma.done [#allocation4], 32
    $region81: #{tpu_custom_call.1} parent=1 // pred_fallthru
      _
    // Predicated region
    $region82: #{tpu_custom_call.1} parent=1 // pred_check
      _
    $region83: #{tpu_custom_call.1} parent=1 // pred_check_branch
      %2081 = sbr.rel (0) target = $region85
    $region84: #{tpu_custom_call.1} parent=1 // pred_region
      %2082 = dma.done [#allocation10], 256
    $region85: #{tpu_custom_call.1} parent=1 // pred_fallthru
      _
    // Predicated region
    $region86: #{tpu_custom_call.1} parent=1 // pred_check
      _
    $region87: #{tpu_custom_call.1} parent=1 // pred_check_branch
      %2084 = sbr.rel (0) target = $region89
    $region88: #{tpu_custom_call.1} parent=1 // pred_region
      %2085 = dma.done [#allocation10], 256
    $region89: #{tpu_custom_call.1} parent=1 // pred_fallthru
      _
    %2086 = vsyncpa [#allocation3], 1
    %2087 = vsyncpa [#allocation6], 1
    %2088 = vsyncpa [#allocation4], 1
    %2089 = vsyncpa [#allocation10], 1

</llo_original>
